<compile_context>
chip_gen: v6e
topology: v6e:2x2x1
jax: 0.10.0
libtpu: 0.0.40
codegen_flags: <defaults>
</compile_context>

<pallas_src>
import functools

import jax
import jax.numpy as jnp
from jax import lax
from jax.experimental import pallas as pl
from jax.experimental.pallas import tpu as pltpu

EPS = 1e-5


def frequency_gate_kernel(x1_ref, x2_ref, w1_ref, bias_ref, wdw_ref, bdw_ref,
                          o_ref, *, hdim, wdim, compute_dtype):
    # x1_ref / x2_ref / o_ref : (1, C, H*W) blocks, one batch element per grid step.
    # w1_ref  : (C, C)    LN-scale-folded 1x1 weight, (out, in) major.
    # bias_ref: (2, C, 1) row 0 = folded 1x1 bias, row 1 = row-sums of w1 (for the mean fold).
    # wdw_ref : (9, C, 1) depthwise 3x3 taps, k = 3*dy + dx, already in compute dtype.
    # bdw_ref : (C, 1)    depthwise bias, in compute dtype.
    hw = hdim * wdim
    f32 = jnp.float32
    cdt = compute_dtype

    x2 = x2_ref[0]                                        # (C, HW), native dtype

    # --- LayerNormGeneral stats over the whole (C,H,W) slab, single pass (no `cen` temp) ---
    x2f = x2.astype(f32)
    mean = jnp.mean(x2f)
    var = jnp.mean(x2f * x2f) - mean * mean
    rstd = lax.rsqrt(jnp.maximum(var, 0.0) + EPS)         # EUP

    # --- 1x1 conv: rstd folded into the (C,C) weight, mean folded into the bias ---
    w = w1_ref[...] * rstd                                # C*C ops, not HW*C
    if x2.dtype == jnp.bfloat16:
        w = w.astype(jnp.bfloat16)                        # bf16 MXU, f32 accumulation
    y = jnp.dot(w, x2, preferred_element_type=f32)        # (C, HW) f32
    b_eff = bias_ref[0] - (mean * rstd) * bias_ref[1]     # (C, 1) f32
    y = (y + b_eff).astype(cdt)                           # (C, HW), compute dtype

    # --- depthwise 3x3, padding=1, on the flat (C, HW) slab: lane rolls + iota masks ---
    lane = lax.broadcasted_iota(jnp.int32, (1, hw), 1)    # flat index i = h*W + w
    ww = lane % wdim
    m_wl = ww >= 1                 # tap reading w-1 stays in-image
    m_wr = ww <= wdim - 2          # tap reading w+1 stays in-image
    m_hu = lane >= wdim            # tap reading h-1 stays in-image
    m_hd = lane < hw - wdim        # tap reading h+1 stays in-image

    y_l = jnp.where(m_wl, pltpu.roll(y, 1, 1), 0)         # value at (h, w-1)
    y_r = jnp.where(m_wr, pltpu.roll(y, hw - 1, 1), 0)    # value at (h, w+1)

    k = lambda dy, dx: wdw_ref[3 * dy + dx]               # (C, 1)
    t0 = y_l * k(0, 0) + y * k(0, 1) + y_r * k(0, 2)      # kernel row dy=0 (needs h-1)
    t1 = y_l * k(1, 0) + y * k(1, 1) + y_r * k(1, 2)      # kernel row dy=1
    t2 = y_l * k(2, 0) + y * k(2, 1) + y_r * k(2, 2)      # kernel row dy=2 (needs h+1)

    acc = (t1
           + jnp.where(m_hu, pltpu.roll(t0, wdim, 1), 0)       # shift down one image row
           + jnp.where(m_hd, pltpu.roll(t2, hw - wdim, 1), 0)  # shift up one image row
           + bdw_ref[...])

    # --- gate ---
    o_ref[0] = (x1_ref[0].astype(cdt) * acc).astype(o_ref.dtype)


def _device_kind():
    try:
        return jax.devices()[0].device_kind.lower()
    except Exception:
        return ""


def _vmem_capacity_bytes():
    try:
        cap = getattr(pltpu.get_tpu_info(), "vmem_capacity_bytes", None)
        if cap:
            return int(cap)
    except Exception:
        pass
    return 64 << 20   # conservative fallback = v7x per-TC VMEM


def frequency_gate(x_nchw, wln, bln, w1_pt, b1, wdw_pt, bdw):
    """x_nchw: (B, 2*dim, H, W). Params keep PyTorch shapes:
       wln, bln: (dim,1,1); w1_pt: (dim,dim,1,1); b1: (dim,); wdw_pt: (dim,1,3,3); bdw: (dim,)."""
    B, C2, H, W = x_nchw.shape
    dim = C2 // 2
    HW = H * W
    f32 = jnp.float32

    kind = _device_kind()
    is_v5e = ("v5 lite" in kind) or ("v5e" in kind) or ("v5litepod" in kind)
    is_v7 = "v7" in kind

    in_dtype = x_nchw.dtype
    compute_dtype = jnp.bfloat16 if (in_dtype == jnp.bfloat16 and not is_v5e) else f32

    # NCHW -> (B, C, H*W): pure reshape, no transpose. Channels on sublanes, H*W on lanes.
    x1 = x_nchw[:, :dim].reshape(B, dim, HW)
    x2 = x_nchw[:, dim:].reshape(B, dim, HW)

    # Fold LN affine into the 1x1 conv:  out = W1 @ ((cen*rstd)*wln + bln) + b1
    #   w1_k[o,i] = W1[o,i]*wln[i]        b1_k[o] = sum_i W1[o,i]*bln[i] + b1[o]
    # The per-batch "-mean*rstd" term is applied in-kernel via rowsum[o] = sum_i w1_k[o,i].
    wln_v = wln.reshape(dim).astype(f32)
    bln_v = bln.reshape(dim).astype(f32)
    w1_mat = w1_pt[:, :, 0, 0].astype(f32)                       # (out, in)
    w1_k = w1_mat * wln_v[None, :]
    b1_k = w1_mat @ bln_v + b1.astype(f32)                       # (dim,)
    bias_k = jnp.stack([b1_k, jnp.sum(w1_k, axis=1)]).reshape(2, dim, 1)

    wdw_k = (wdw_pt[:, 0].reshape(dim, 9).T                      # (9, dim), k = 3*dy+dx
             .reshape(9, dim, 1).astype(compute_dtype))
    bdw_k = bdw.reshape(dim, 1).astype(compute_dtype)

    # Explicit VMEM budget (v5e default scoped limit is 16 MiB); cap at real device capacity.
    io_bytes = jnp.dtype(in_dtype).itemsize
    c_bytes = jnp.dtype(compute_dtype).itemsize
    slab = HW * dim
    est = (3 * 2 * slab * io_bytes          # x1 / x2 / out blocks, double-buffered
           + 6 * slab * 4                   # live f32 intermediates (x2f, x2f^2, matmul out, ...)
           + 10 * slab * c_bytes            # y, y_l, y_r, t0..t2, acc, gate in compute dtype
           + 8 * HW * 4                     # iota + masks
           + 4 * (dim * dim + 16 * dim)     # constants
           + (2 << 20))                     # headroom
    vmem_limit = int(min(max(est, 32 << 20), int(0.9 * _vmem_capacity_bytes())))

    semantics_fast = ("parallel",)
    if is_v7 and B % 2 == 0 and hasattr(pltpu, "CORE_PARALLEL"):
        semantics_fast = (pltpu.CORE_PARALLEL,)   # shard batch steps across the 2 TensorCores

    def build(fast):
        def const_spec(shape):
            idx = lambda b: (0,) * len(shape)
            if fast:
                try:  # single-buffer grid-invariant operands
                    return pl.BlockSpec(shape, idx, pipeline_mode=pl.Buffered(1))
                except Exception:
                    pass
            return pl.BlockSpec(shape, idx)

        blk = lambda b: (b, 0, 0)
        return pl.pallas_call(
            functools.partial(frequency_gate_kernel, hdim=H, wdim=W,
                              compute_dtype=compute_dtype),
            out_shape=jax.ShapeDtypeStruct((B, dim, HW), in_dtype),
            grid_spec=pltpu.PrefetchScalarGridSpec(
                num_scalar_prefetch=0,
                grid=(B,),
                in_specs=[
                    pl.BlockSpec((1, dim, HW), blk),    # x1
                    pl.BlockSpec((1, dim, HW), blk),    # x2
                    const_spec((dim, dim)),             # folded 1x1 weight
                    const_spec((2, dim, 1)),            # folded bias + rowsums
                    const_spec((9, dim, 1)),            # depthwise taps
                    const_spec((dim, 1)),               # depthwise bias
                ],
                out_specs=pl.BlockSpec((1, dim, HW), blk),
            ),
            compiler_params=pltpu.CompilerParams(
                dimension_semantics=semantics_fast if fast else ("arbitrary",),
                vmem_limit_bytes=vmem_limit,
            ),
        )

    args = (x1, x2, w1_k, bias_k, wdw_k, bdw_k)
    try:
        out = build(True)(*args)
    except Exception:
        # Conservative fallback: default buffering + "arbitrary" semantics.
        out = build(False)(*args)

    return out.reshape(B, dim, H, W)


def frequency_gate_ref(x, wln, bln, w1_pt, b1, wdw_pt, bdw):
    """Pure-JAX reference in NCHW, mirrors the PyTorch module exactly."""
    dim = x.shape[1] // 2
    x1, x2 = x[:, :dim], x[:, dim:]
    mean = x2.mean(axis=(1, 2, 3), keepdims=True)
    c = x2 - mean
    s = (c * c).mean(axis=(1, 2, 3), keepdims=True)
    xn = c / jnp.sqrt(s + EPS)
    xn = xn * wln.reshape(1, dim, 1, 1) + bln.reshape(1, dim, 1, 1)
    y = lax.conv_general_dilated(xn, w1_pt, (1, 1), 'VALID',
                                 dimension_numbers=('NCHW', 'OIHW', 'NCHW'))
    y = y + b1.reshape(1, dim, 1, 1)
    y = lax.conv_general_dilated(y, wdw_pt, (1, 1), 'SAME',
                                 feature_group_count=dim,
                                 dimension_numbers=('NCHW', 'OIHW', 'NCHW'))
    y = y + bdw.reshape(1, dim, 1, 1)
    return x1 * y


if __name__ == "__main__":
    B, dim, H, W = 2, 4, 16, 16
    key = jax.random.PRNGKey(0)
    kx, k1, k2, k3, k4, k5, k6 = jax.random.split(key, 7)

    x = jax.random.normal(kx, (B, 2 * dim, H, W), jnp.float32)

    # Deterministic synthetic parameters (PyTorch shapes).
    wln = 1.0 + 0.1 * jax.random.normal(k1, (dim, 1, 1), jnp.float32)   # LayerNormGeneral weight
    bln = 0.1 * jax.random.normal(k2, (dim, 1, 1), jnp.float32)         # LayerNormGeneral bias
    w1_pt = 0.2 * jax.random.normal(k3, (dim, dim, 1, 1), jnp.float32)  # Conv2d(dim,dim,1)
    b1 = 0.1 * jax.random.normal(k4, (dim,), jnp.float32)
    wdw_pt = 0.2 * jax.random.normal(k5, (dim, 1, 3, 3), jnp.float32)   # Conv2d(dim,dim,3,groups=dim)
    bdw = 0.1 * jax.random.normal(k6, (dim,), jnp.float32)

    out = frequency_gate(x, wln, bln, w1_pt, b1, wdw_pt, bdw)
    jax.block_until_ready(out)

    ref = frequency_gate_ref(x, wln, bln, w1_pt, b1, wdw_pt, bdw)
    assert out.shape == (B, dim, H, W)
    assert jnp.allclose(out, ref, rtol=1e-4, atol=1e-4), \
        f"max abs err = {jnp.max(jnp.abs(out - ref))}"
    print("KERNEL_OK")
</pallas_src>

<mosaic_0001>
module attributes {stable_mosaic.version = 11 : i64} {
  func.func @frequency_gate_kernel(%arg0: i32, %arg1: memref<1x4x256xf32, #tpu.memory_space<vmem>>, %arg2: memref<1x4x256xf32, #tpu.memory_space<vmem>>, %arg3: memref<4x4xf32, #tpu.memory_space<vmem>>, %arg4: memref<2x4x1xf32, #tpu.memory_space<vmem>>, %arg5: memref<9x4x1xf32, #tpu.memory_space<vmem>>, %arg6: memref<4x1xf32, #tpu.memory_space<vmem>>, %arg7: memref<1x4x256xf32, #tpu.memory_space<vmem>>) attributes {dimension_semantics = [#tpu.dimension_semantics<parallel>], iteration_bounds = array<i64: 2>, scalar_prefetch = 0 : i64, scratch_operands = 0 : i64, tpu.core_type = #tpu.core_type<tc>, window_params = [{transform_indices = @transform_0, window_bounds = array<i64: 1, 4, 256>}, {transform_indices = @transform_1, window_bounds = array<i64: 1, 4, 256>}, {pipeline_mode = #tpu.pipeline_mode<synchronous>, transform_indices = @transform_2, window_bounds = array<i64: 4, 4>}, {pipeline_mode = #tpu.pipeline_mode<synchronous>, transform_indices = @transform_3, window_bounds = array<i64: 2, 4, 1>}, {pipeline_mode = #tpu.pipeline_mode<synchronous>, transform_indices = @transform_4, window_bounds = array<i64: 9, 4, 1>}, {pipeline_mode = #tpu.pipeline_mode<synchronous>, transform_indices = @transform_5, window_bounds = array<i64: 4, 1>}, {transform_indices = @transform_6, window_bounds = array<i64: 1, 4, 256>}]} {
    %c0 = arith.constant 0 : index
    %c0_0 = arith.constant 0 : index
    %c0_1 = arith.constant 0 : index
    %0 = vector.load %arg2[%c0, %c0_0, %c0_1] : memref<1x4x256xf32, #tpu.memory_space<vmem>>, vector<1x4x256xf32>
    %1 = vector.shape_cast %0 : vector<1x4x256xf32> to vector<4x256xf32>
    %2 = vector.shape_cast %1 : vector<4x256xf32> to vector<1x4x256xf32>
    %cst = arith.constant dense<0.000000e+00> : vector<1xf32>
    %3 = vector.multi_reduction <add>, %2, %cst [1, 2] : vector<1x4x256xf32> to vector<1xf32>
    %4 = vector.shape_cast %3 : vector<1xf32> to vector<1x1x1xf32>
    %5 = vector.extract %4[0, 0, 0] : f32 from vector<1x1x1xf32>
    %cst_2 = arith.constant 1.024000e+03 : f32
    %6 = arith.divf %5, %cst_2 : f32
    %7 = arith.mulf %1, %1 : vector<4x256xf32>
    %8 = vector.shape_cast %7 : vector<4x256xf32> to vector<1x4x256xf32>
    %cst_3 = arith.constant dense<0.000000e+00> : vector<1xf32>
    %9 = vector.multi_reduction <add>, %8, %cst_3 [1, 2] : vector<1x4x256xf32> to vector<1xf32>
    %10 = vector.shape_cast %9 : vector<1xf32> to vector<1x1x1xf32>
    %11 = vector.extract %10[0, 0, 0] : f32 from vector<1x1x1xf32>
    %cst_4 = arith.constant 1.024000e+03 : f32
    %12 = arith.divf %11, %cst_4 : f32
    %13 = arith.mulf %6, %6 : f32
    %14 = arith.subf %12, %13 : f32
    %cst_5 = arith.constant 0.000000e+00 : f32
    %15 = arith.maximumf %14, %cst_5 : f32
    %cst_6 = arith.constant 9.99999974E-6 : f32
    %16 = arith.addf %15, %cst_6 : f32
    %17 = math.rsqrt %16 : f32
    %c0_7 = arith.constant 0 : index
    %c0_8 = arith.constant 0 : index
    %18 = vector.load %arg3[%c0_7, %c0_8] : memref<4x4xf32, #tpu.memory_space<vmem>>, vector<4x4xf32>
    %19 = vector.broadcast %17 : f32 to vector<4x4xf32>
    %20 = arith.mulf %18, %19 : vector<4x4xf32>
    %cst_9 = arith.constant dense<0.000000e+00> : vector<4x256xf32>
    %21 = tpu.matmul %20, %1, %cst_9 {dimension_numbers = #tpu.dot_dimension_numbers<[1], [0], [0], [1], [0, 0, 1, 1], [], []>} : vector<4x4xf32>, vector<4x256xf32>, vector<4x256xf32> -> vector<4x256xf32>
    %c0_10 = arith.constant 0 : index
    %c0_11 = arith.constant 0 : index
    %c0_12 = arith.constant 0 : index
    %22 = vector.load %arg4[%c0_10, %c0_11, %c0_12] : memref<2x4x1xf32, #tpu.memory_space<vmem>>, vector<1x4x1xf32>
    %23 = vector.shape_cast %22 : vector<1x4x1xf32> to vector<4x1xf32>
    %24 = arith.mulf %6, %17 : f32
    %c1 = arith.constant 1 : index
    %c0_13 = arith.constant 0 : index
    %c0_14 = arith.constant 0 : index
    %25 = vector.load %arg4[%c1, %c0_13, %c0_14] : memref<2x4x1xf32, #tpu.memory_space<vmem>>, vector<1x4x1xf32>
    %26 = vector.shape_cast %25 : vector<1x4x1xf32> to vector<4x1xf32>
    %27 = vector.broadcast %24 : f32 to vector<4x1xf32>
    %28 = arith.mulf %27, %26 : vector<4x1xf32>
    %29 = arith.subf %23, %28 : vector<4x1xf32>
    %30 = vector.broadcast %29 : vector<4x1xf32> to vector<4x256xf32>
    %31 = arith.addf %21, %30 : vector<4x256xf32>
    %32 = tpu.iota {dimensions = array<i32: 1>} : vector<1x256xi32>
    %c16_i32 = arith.constant 16 : i32
    %c0_i32 = arith.constant 0 : i32
    %33 = arith.cmpi eq, %c16_i32, %c0_i32 : i32
    %c1_i32 = arith.constant 1 : i32
    %34 = arith.select %33, %c1_i32, %c16_i32 : i32
    %35 = vector.broadcast %34 : i32 to vector<1x256xi32>
    %36 = arith.remsi %32, %35 : vector<1x256xi32>
    %c0_i32_15 = arith.constant 0 : i32
    %37 = vector.broadcast %c0_i32_15 : i32 to vector<1x256xi32>
    %38 = arith.cmpi ne, %36, %37 : vector<1x256xi32>
    %c0_i32_16 = arith.constant 0 : i32
    %39 = vector.broadcast %c0_i32_16 : i32 to vector<1x256xi32>
    %40 = arith.cmpi slt, %36, %39 : vector<1x256xi32>
    %c0_i32_17 = arith.constant 0 : i32
    %41 = arith.cmpi slt, %34, %c0_i32_17 : i32
    %42 = vector.broadcast %41 : i1 to vector<1x256xi1>
    %43 = vector.broadcast %42 : vector<1x256xi1> to vector<1x256xi1>
    %44 = arith.xori %40, %43 : vector<1x256xi1>
    %45 = arith.andi %44, %38 : vector<1x256xi1>
    %46 = vector.broadcast %34 : i32 to vector<1x256xi32>
    %47 = arith.addi %36, %46 : vector<1x256xi32>
    %48 = arith.select %45, %47, %36 : vector<1x256xi1>, vector<1x256xi32>
    %c1_i32_18 = arith.constant 1 : i32
    %49 = vector.broadcast %c1_i32_18 : i32 to vector<1x256xi32>
    %50 = arith.cmpi sge, %48, %49 : vector<1x256xi32>
    %c14_i32 = arith.constant 14 : i32
    %51 = vector.broadcast %c14_i32 : i32 to vector<1x256xi32>
    %52 = arith.cmpi sle, %48, %51 : vector<1x256xi32>
    %c16_i32_19 = arith.constant 16 : i32
    %53 = vector.broadcast %c16_i32_19 : i32 to vector<1x256xi32>
    %54 = arith.cmpi sge, %32, %53 : vector<1x256xi32>
    %c240_i32 = arith.constant 240 : i32
    %55 = vector.broadcast %c240_i32 : i32 to vector<1x256xi32>
    %56 = arith.cmpi slt, %32, %55 : vector<1x256xi32>
    %c1_i32_20 = arith.constant 1 : i32
    %57 = tpu.dynamic_rotate %31 by %c1_i32_20 dim 1 : vector<4x256xf32>, i32 -> vector<4x256xf32>
    %c0_i32_21 = arith.constant 0 : i32
    %58 = arith.sitofp %c0_i32_21 : i32 to f32
    %59 = vector.shape_cast %50 : vector<1x256xi1> to vector<1x256xi1>
    %60 = vector.broadcast %59 : vector<1x256xi1> to vector<4x256xi1>
    %61 = vector.broadcast %58 : f32 to vector<4x256xf32>
    %62 = arith.select %60, %57, %61 : vector<4x256xi1>, vector<4x256xf32>
    %c255_i32 = arith.constant 255 : i32
    %63 = tpu.dynamic_rotate %31 by %c255_i32 dim 1 : vector<4x256xf32>, i32 -> vector<4x256xf32>
    %c0_i32_22 = arith.constant 0 : i32
    %64 = arith.sitofp %c0_i32_22 : i32 to f32
    %65 = vector.shape_cast %52 : vector<1x256xi1> to vector<1x256xi1>
    %66 = vector.broadcast %65 : vector<1x256xi1> to vector<4x256xi1>
    %67 = vector.broadcast %64 : f32 to vector<4x256xf32>
    %68 = arith.select %66, %63, %67 : vector<4x256xi1>, vector<4x256xf32>
    %c0_23 = arith.constant 0 : index
    %c0_24 = arith.constant 0 : index
    %c0_25 = arith.constant 0 : index
    %69 = vector.load %arg5[%c0_23, %c0_24, %c0_25] : memref<9x4x1xf32, #tpu.memory_space<vmem>>, vector<1x4x1xf32>
    %70 = vector.shape_cast %69 : vector<1x4x1xf32> to vector<4x1xf32>
    %71 = vector.broadcast %70 : vector<4x1xf32> to vector<4x256xf32>
    %72 = arith.mulf %62, %71 : vector<4x256xf32>
    %c1_26 = arith.constant 1 : index
    %c0_27 = arith.constant 0 : index
    %c0_28 = arith.constant 0 : index
    %73 = vector.load %arg5[%c1_26, %c0_27, %c0_28] : memref<9x4x1xf32, #tpu.memory_space<vmem>>, vector<1x4x1xf32>
    %74 = vector.shape_cast %73 : vector<1x4x1xf32> to vector<4x1xf32>
    %75 = vector.broadcast %74 : vector<4x1xf32> to vector<4x256xf32>
    %76 = arith.mulf %31, %75 : vector<4x256xf32>
    %77 = arith.addf %72, %76 : vector<4x256xf32>
    %c2 = arith.constant 2 : index
    %c0_29 = arith.constant 0 : index
    %c0_30 = arith.constant 0 : index
    %78 = vector.load %arg5[%c2, %c0_29, %c0_30] : memref<9x4x1xf32, #tpu.memory_space<vmem>>, vector<1x4x1xf32>
    %79 = vector.shape_cast %78 : vector<1x4x1xf32> to vector<4x1xf32>
    %80 = vector.broadcast %79 : vector<4x1xf32> to vector<4x256xf32>
    %81 = arith.mulf %68, %80 : vector<4x256xf32>
    %82 = arith.addf %77, %81 : vector<4x256xf32>
    %c3 = arith.constant 3 : index
    %c0_31 = arith.constant 0 : index
    %c0_32 = arith.constant 0 : index
    %83 = vector.load %arg5[%c3, %c0_31, %c0_32] : memref<9x4x1xf32, #tpu.memory_space<vmem>>, vector<1x4x1xf32>
    %84 = vector.shape_cast %83 : vector<1x4x1xf32> to vector<4x1xf32>
    %85 = vector.broadcast %84 : vector<4x1xf32> to vector<4x256xf32>
    %86 = arith.mulf %62, %85 : vector<4x256xf32>
    %c4 = arith.constant 4 : index
    %c0_33 = arith.constant 0 : index
    %c0_34 = arith.constant 0 : index
    %87 = vector.load %arg5[%c4, %c0_33, %c0_34] : memref<9x4x1xf32, #tpu.memory_space<vmem>>, vector<1x4x1xf32>
    %88 = vector.shape_cast %87 : vector<1x4x1xf32> to vector<4x1xf32>
    %89 = vector.broadcast %88 : vector<4x1xf32> to vector<4x256xf32>
    %90 = arith.mulf %31, %89 : vector<4x256xf32>
    %91 = arith.addf %86, %90 : vector<4x256xf32>
    %c5 = arith.constant 5 : index
    %c0_35 = arith.constant 0 : index
    %c0_36 = arith.constant 0 : index
    %92 = vector.load %arg5[%c5, %c0_35, %c0_36] : memref<9x4x1xf32, #tpu.memory_space<vmem>>, vector<1x4x1xf32>
    %93 = vector.shape_cast %92 : vector<1x4x1xf32> to vector<4x1xf32>
    %94 = vector.broadcast %93 : vector<4x1xf32> to vector<4x256xf32>
    %95 = arith.mulf %68, %94 : vector<4x256xf32>
    %96 = arith.addf %91, %95 : vector<4x256xf32>
    %c6 = arith.constant 6 : index
    %c0_37 = arith.constant 0 : index
    %c0_38 = arith.constant 0 : index
    %97 = vector.load %arg5[%c6, %c0_37, %c0_38] : memref<9x4x1xf32, #tpu.memory_space<vmem>>, vector<1x4x1xf32>
    %98 = vector.shape_cast %97 : vector<1x4x1xf32> to vector<4x1xf32>
    %99 = vector.broadcast %98 : vector<4x1xf32> to vector<4x256xf32>
    %100 = arith.mulf %62, %99 : vector<4x256xf32>
    %c7 = arith.constant 7 : index
    %c0_39 = arith.constant 0 : index
    %c0_40 = arith.constant 0 : index
    %101 = vector.load %arg5[%c7, %c0_39, %c0_40] : memref<9x4x1xf32, #tpu.memory_space<vmem>>, vector<1x4x1xf32>
    %102 = vector.shape_cast %101 : vector<1x4x1xf32> to vector<4x1xf32>
    %103 = vector.broadcast %102 : vector<4x1xf32> to vector<4x256xf32>
    %104 = arith.mulf %31, %103 : vector<4x256xf32>
    %105 = arith.addf %100, %104 : vector<4x256xf32>
    %c8 = arith.constant 8 : index
    %c0_41 = arith.constant 0 : index
    %c0_42 = arith.constant 0 : index
    %106 = vector.load %arg5[%c8, %c0_41, %c0_42] : memref<9x4x1xf32, #tpu.memory_space<vmem>>, vector<1x4x1xf32>
    %107 = vector.shape_cast %106 : vector<1x4x1xf32> to vector<4x1xf32>
    %108 = vector.broadcast %107 : vector<4x1xf32> to vector<4x256xf32>
    %109 = arith.mulf %68, %108 : vector<4x256xf32>
    %110 = arith.addf %105, %109 : vector<4x256xf32>
    %c16_i32_43 = arith.constant 16 : i32
    %111 = tpu.dynamic_rotate %82 by %c16_i32_43 dim 1 : vector<4x256xf32>, i32 -> vector<4x256xf32>
    %c0_i32_44 = arith.constant 0 : i32
    %112 = arith.sitofp %c0_i32_44 : i32 to f32
    %113 = vector.shape_cast %54 : vector<1x256xi1> to vector<1x256xi1>
    %114 = vector.broadcast %113 : vector<1x256xi1> to vector<4x256xi1>
    %115 = vector.broadcast %112 : f32 to vector<4x256xf32>
    %116 = arith.select %114, %111, %115 : vector<4x256xi1>, vector<4x256xf32>
    %117 = arith.addf %96, %116 : vector<4x256xf32>
    %c240_i32_45 = arith.constant 240 : i32
    %118 = tpu.dynamic_rotate %110 by %c240_i32_45 dim 1 : vector<4x256xf32>, i32 -> vector<4x256xf32>
    %c0_i32_46 = arith.constant 0 : i32
    %119 = arith.sitofp %c0_i32_46 : i32 to f32
    %120 = vector.shape_cast %56 : vector<1x256xi1> to vector<1x256xi1>
    %121 = vector.broadcast %120 : vector<1x256xi1> to vector<4x256xi1>
    %122 = vector.broadcast %119 : f32 to vector<4x256xf32>
    %123 = arith.select %121, %118, %122 : vector<4x256xi1>, vector<4x256xf32>
    %124 = arith.addf %117, %123 : vector<4x256xf32>
    %c0_47 = arith.constant 0 : index
    %c0_48 = arith.constant 0 : index
    %125 = vector.load %arg6[%c0_47, %c0_48] : memref<4x1xf32, #tpu.memory_space<vmem>>, vector<4x1xf32>
    %126 = vector.broadcast %125 : vector<4x1xf32> to vector<4x256xf32>
    %127 = arith.addf %124, %126 : vector<4x256xf32>
    %c0_49 = arith.constant 0 : index
    %c0_50 = arith.constant 0 : index
    %c0_51 = arith.constant 0 : index
    %128 = vector.load %arg1[%c0_49, %c0_50, %c0_51] : memref<1x4x256xf32, #tpu.memory_space<vmem>>, vector<1x4x256xf32>
    %129 = vector.shape_cast %128 : vector<1x4x256xf32> to vector<4x256xf32>
    %130 = arith.mulf %129, %127 : vector<4x256xf32>
    %c0_52 = arith.constant 0 : index
    %c0_53 = arith.constant 0 : index
    %c0_54 = arith.constant 0 : index
    %131 = vector.load %arg7[%c0_52, %c0_53, %c0_54] : memref<1x4x256xf32, #tpu.memory_space<vmem>>, vector<1x4x256xf32>
    %132 = vector.shape_cast %131 : vector<1x4x256xf32> to vector<4x256xf32>
    %133 = vector.shape_cast %130 : vector<4x256xf32> to vector<1x4x256xf32>
    tpu.vector_store %arg7[%c0_52, %c0_53, %c0_54], %133 {strides = array<i32>} : memref<1x4x256xf32, #tpu.memory_space<vmem>>, vector<1x4x256xf32>,
    return
  }
  func.func @transform_0(%arg0: i32) -> (i32, i32, i32) {
    %c0_i32 = arith.constant 0 : i32
    %c0_i32_0 = arith.constant 0 : i32
    %c0_i32_1 = arith.constant 0 : i32
    return %arg0, %c0_i32, %c0_i32_0 : i32, i32, i32
  }
  func.func @transform_1(%arg0: i32) -> (i32, i32, i32) {
    %c0_i32 = arith.constant 0 : i32
    %c0_i32_0 = arith.constant 0 : i32
    %c0_i32_1 = arith.constant 0 : i32
    return %arg0, %c0_i32, %c0_i32_0 : i32, i32, i32
  }
  func.func @transform_2(%arg0: i32) -> (i32, i32) {
    %c0_i32 = arith.constant 0 : i32
    %c0_i32_0 = arith.constant 0 : i32
    %c0_i32_1 = arith.constant 0 : i32
    return %c0_i32, %c0_i32_0 : i32, i32
  }
  func.func @transform_3(%arg0: i32) -> (i32, i32, i32) {
    %c0_i32 = arith.constant 0 : i32
    %c0_i32_0 = arith.constant 0 : i32
    %c0_i32_1 = arith.constant 0 : i32
    %c0_i32_2 = arith.constant 0 : i32
    return %c0_i32, %c0_i32_0, %c0_i32_1 : i32, i32, i32
  }
  func.func @transform_4(%arg0: i32) -> (i32, i32, i32) {
    %c0_i32 = arith.constant 0 : i32
    %c0_i32_0 = arith.constant 0 : i32
    %c0_i32_1 = arith.constant 0 : i32
    %c0_i32_2 = arith.constant 0 : i32
    return %c0_i32, %c0_i32_0, %c0_i32_1 : i32, i32, i32
  }
  func.func @transform_5(%arg0: i32) -> (i32, i32) {
    %c0_i32 = arith.constant 0 : i32
    %c0_i32_0 = arith.constant 0 : i32
    %c0_i32_1 = arith.constant 0 : i32
    return %c0_i32, %c0_i32_0 : i32, i32
  }
  func.func @transform_6(%arg0: i32) -> (i32, i32, i32) {
    %c0_i32 = arith.constant 0 : i32
    %c0_i32_0 = arith.constant 0 : i32
    %c0_i32_1 = arith.constant 0 : i32
    return %arg0, %c0_i32, %c0_i32_0 : i32, i32, i32
  }
}

module attributes {stable_mosaic.version = 11 : i64} {
  func.func @frequency_gate_kernel(%arg0: i32, %arg1: memref<1x4x256xf32, #tpu.memory_space<vmem>>, %arg2: memref<1x4x256xf32, #tpu.memory_space<vmem>>, %arg3: memref<4x4xf32, #tpu.memory_space<vmem>>, %arg4: memref<2x4x1xf32, #tpu.memory_space<vmem>>, %arg5: memref<9x4x1xf32, #tpu.memory_space<vmem>>, %arg6: memref<4x1xf32, #tpu.memory_space<vmem>>, %arg7: memref<1x4x256xf32, #tpu.memory_space<vmem>>) attributes {dimension_semantics = [#tpu.dimension_semantics<arbitrary>], iteration_bounds = array<i64: 2>, scalar_prefetch = 0 : i64, scratch_operands = 0 : i64, tpu.core_type = #tpu.core_type<tc>, window_params = [{transform_indices = @transform_0, window_bounds = array<i64: 1, 4, 256>}, {transform_indices = @transform_1, window_bounds = array<i64: 1, 4, 256>}, {pipeline_mode = #tpu.pipeline_mode<synchronous>, transform_indices = @transform_2, window_bounds = array<i64: 4, 4>}, {pipeline_mode = #tpu.pipeline_mode<synchronous>, transform_indices = @transform_3, window_bounds = array<i64: 2, 4, 1>}, {pipeline_mode = #tpu.pipeline_mode<synchronous>, transform_indices = @transform_4, window_bounds = array<i64: 9, 4, 1>}, {pipeline_mode = #tpu.pipeline_mode<synchronous>, transform_indices = @transform_5, window_bounds = array<i64: 4, 1>}, {transform_indices = @transform_6, window_bounds = array<i64: 1, 4, 256>}]} {
    %c0 = arith.constant 0 : index
    %c0_0 = arith.constant 0 : index
    %c0_1 = arith.constant 0 : index
    %0 = vector.load %arg2[%c0, %c0_0, %c0_1] : memref<1x4x256xf32, #tpu.memory_space<vmem>>, vector<1x4x256xf32>
    %1 = vector.shape_cast %0 : vector<1x4x256xf32> to vector<4x256xf32>
    %2 = vector.shape_cast %1 : vector<4x256xf32> to vector<1x4x256xf32>
    %cst = arith.constant dense<0.000000e+00> : vector<1xf32>
    %3 = vector.multi_reduction <add>, %2, %cst [1, 2] : vector<1x4x256xf32> to vector<1xf32>
    %4 = vector.shape_cast %3 : vector<1xf32> to vector<1x1x1xf32>
    %5 = vector.extract %4[0, 0, 0] : f32 from vector<1x1x1xf32>
    %cst_2 = arith.constant 1.024000e+03 : f32
    %6 = arith.divf %5, %cst_2 : f32
    %7 = arith.mulf %1, %1 : vector<4x256xf32>
    %8 = vector.shape_cast %7 : vector<4x256xf32> to vector<1x4x256xf32>
    %cst_3 = arith.constant dense<0.000000e+00> : vector<1xf32>
    %9 = vector.multi_reduction <add>, %8, %cst_3 [1, 2] : vector<1x4x256xf32> to vector<1xf32>
    %10 = vector.shape_cast %9 : vector<1xf32> to vector<1x1x1xf32>
    %11 = vector.extract %10[0, 0, 0] : f32 from vector<1x1x1xf32>
    %cst_4 = arith.constant 1.024000e+03 : f32
    %12 = arith.divf %11, %cst_4 : f32
    %13 = arith.mulf %6, %6 : f32
    %14 = arith.subf %12, %13 : f32
    %cst_5 = arith.constant 0.000000e+00 : f32
    %15 = arith.maximumf %14, %cst_5 : f32
    %cst_6 = arith.constant 9.99999974E-6 : f32
    %16 = arith.addf %15, %cst_6 : f32
    %17 = math.rsqrt %16 : f32
    %c0_7 = arith.constant 0 : index
    %c0_8 = arith.constant 0 : index
    %18 = vector.load %arg3[%c0_7, %c0_8] : memref<4x4xf32, #tpu.memory_space<vmem>>, vector<4x4xf32>
    %19 = vector.broadcast %17 : f32 to vector<4x4xf32>
    %20 = arith.mulf %18, %19 : vector<4x4xf32>
    %cst_9 = arith.constant dense<0.000000e+00> : vector<4x256xf32>
    %21 = tpu.matmul %20, %1, %cst_9 {dimension_numbers = #tpu.dot_dimension_numbers<[1], [0], [0], [1], [0, 0, 1, 1], [], []>} : vector<4x4xf32>, vector<4x256xf32>, vector<4x256xf32> -> vector<4x256xf32>
    %c0_10 = arith.constant 0 : index
    %c0_11 = arith.constant 0 : index
    %c0_12 = arith.constant 0 : index
    %22 = vector.load %arg4[%c0_10, %c0_11, %c0_12] : memref<2x4x1xf32, #tpu.memory_space<vmem>>, vector<1x4x1xf32>
    %23 = vector.shape_cast %22 : vector<1x4x1xf32> to vector<4x1xf32>
    %24 = arith.mulf %6, %17 : f32
    %c1 = arith.constant 1 : index
    %c0_13 = arith.constant 0 : index
    %c0_14 = arith.constant 0 : index
    %25 = vector.load %arg4[%c1, %c0_13, %c0_14] : memref<2x4x1xf32, #tpu.memory_space<vmem>>, vector<1x4x1xf32>
    %26 = vector.shape_cast %25 : vector<1x4x1xf32> to vector<4x1xf32>
    %27 = vector.broadcast %24 : f32 to vector<4x1xf32>
    %28 = arith.mulf %27, %26 : vector<4x1xf32>
    %29 = arith.subf %23, %28 : vector<4x1xf32>
    %30 = vector.broadcast %29 : vector<4x1xf32> to vector<4x256xf32>
    %31 = arith.addf %21, %30 : vector<4x256xf32>
    %32 = tpu.iota {dimensions = array<i32: 1>} : vector<1x256xi32>
    %c16_i32 = arith.constant 16 : i32
    %c0_i32 = arith.constant 0 : i32
    %33 = arith.cmpi eq, %c16_i32, %c0_i32 : i32
    %c1_i32 = arith.constant 1 : i32
    %34 = arith.select %33, %c1_i32, %c16_i32 : i32
    %35 = vector.broadcast %34 : i32 to vector<1x256xi32>
    %36 = arith.remsi %32, %35 : vector<1x256xi32>
    %c0_i32_15 = arith.constant 0 : i32
    %37 = vector.broadcast %c0_i32_15 : i32 to vector<1x256xi32>
    %38 = arith.cmpi ne, %36, %37 : vector<1x256xi32>
    %c0_i32_16 = arith.constant 0 : i32
    %39 = vector.broadcast %c0_i32_16 : i32 to vector<1x256xi32>
    %40 = arith.cmpi slt, %36, %39 : vector<1x256xi32>
    %c0_i32_17 = arith.constant 0 : i32
    %41 = arith.cmpi slt, %34, %c0_i32_17 : i32
    %42 = vector.broadcast %41 : i1 to vector<1x256xi1>
    %43 = vector.broadcast %42 : vector<1x256xi1> to vector<1x256xi1>
    %44 = arith.xori %40, %43 : vector<1x256xi1>
    %45 = arith.andi %44, %38 : vector<1x256xi1>
    %46 = vector.broadcast %34 : i32 to vector<1x256xi32>
    %47 = arith.addi %36, %46 : vector<1x256xi32>
    %48 = arith.select %45, %47, %36 : vector<1x256xi1>, vector<1x256xi32>
    %c1_i32_18 = arith.constant 1 : i32
    %49 = vector.broadcast %c1_i32_18 : i32 to vector<1x256xi32>
    %50 = arith.cmpi sge, %48, %49 : vector<1x256xi32>
    %c14_i32 = arith.constant 14 : i32
    %51 = vector.broadcast %c14_i32 : i32 to vector<1x256xi32>
    %52 = arith.cmpi sle, %48, %51 : vector<1x256xi32>
    %c16_i32_19 = arith.constant 16 : i32
    %53 = vector.broadcast %c16_i32_19 : i32 to vector<1x256xi32>
    %54 = arith.cmpi sge, %32, %53 : vector<1x256xi32>
    %c240_i32 = arith.constant 240 : i32
    %55 = vector.broadcast %c240_i32 : i32 to vector<1x256xi32>
    %56 = arith.cmpi slt, %32, %55 : vector<1x256xi32>
    %c1_i32_20 = arith.constant 1 : i32
    %57 = tpu.dynamic_rotate %31 by %c1_i32_20 dim 1 : vector<4x256xf32>, i32 -> vector<4x256xf32>
    %c0_i32_21 = arith.constant 0 : i32
    %58 = arith.sitofp %c0_i32_21 : i32 to f32
    %59 = vector.shape_cast %50 : vector<1x256xi1> to vector<1x256xi1>
    %60 = vector.broadcast %59 : vector<1x256xi1> to vector<4x256xi1>
    %61 = vector.broadcast %58 : f32 to vector<4x256xf32>
    %62 = arith.select %60, %57, %61 : vector<4x256xi1>, vector<4x256xf32>
    %c255_i32 = arith.constant 255 : i32
    %63 = tpu.dynamic_rotate %31 by %c255_i32 dim 1 : vector<4x256xf32>, i32 -> vector<4x256xf32>
    %c0_i32_22 = arith.constant 0 : i32
    %64 = arith.sitofp %c0_i32_22 : i32 to f32
    %65 = vector.shape_cast %52 : vector<1x256xi1> to vector<1x256xi1>
    %66 = vector.broadcast %65 : vector<1x256xi1> to vector<4x256xi1>
    %67 = vector.broadcast %64 : f32 to vector<4x256xf32>
    %68 = arith.select %66, %63, %67 : vector<4x256xi1>, vector<4x256xf32>
    %c0_23 = arith.constant 0 : index
    %c0_24 = arith.constant 0 : index
    %c0_25 = arith.constant 0 : index
    %69 = vector.load %arg5[%c0_23, %c0_24, %c0_25] : memref<9x4x1xf32, #tpu.memory_space<vmem>>, vector<1x4x1xf32>
    %70 = vector.shape_cast %69 : vector<1x4x1xf32> to vector<4x1xf32>
    %71 = vector.broadcast %70 : vector<4x1xf32> to vector<4x256xf32>
    %72 = arith.mulf %62, %71 : vector<4x256xf32>
    %c1_26 = arith.constant 1 : index
    %c0_27 = arith.constant 0 : index
    %c0_28 = arith.constant 0 : index
    %73 = vector.load %arg5[%c1_26, %c0_27, %c0_28] : memref<9x4x1xf32, #tpu.memory_space<vmem>>, vector<1x4x1xf32>
    %74 = vector.shape_cast %73 : vector<1x4x1xf32> to vector<4x1xf32>
    %75 = vector.broadcast %74 : vector<4x1xf32> to vector<4x256xf32>
    %76 = arith.mulf %31, %75 : vector<4x256xf32>
    %77 = arith.addf %72, %76 : vector<4x256xf32>
    %c2 = arith.constant 2 : index
    %c0_29 = arith.constant 0 : index
    %c0_30 = arith.constant 0 : index
    %78 = vector.load %arg5[%c2, %c0_29, %c0_30] : memref<9x4x1xf32, #tpu.memory_space<vmem>>, vector<1x4x1xf32>
    %79 = vector.shape_cast %78 : vector<1x4x1xf32> to vector<4x1xf32>
    %80 = vector.broadcast %79 : vector<4x1xf32> to vector<4x256xf32>
    %81 = arith.mulf %68, %80 : vector<4x256xf32>
    %82 = arith.addf %77, %81 : vector<4x256xf32>
    %c3 = arith.constant 3 : index
    %c0_31 = arith.constant 0 : index
    %c0_32 = arith.constant 0 : index
    %83 = vector.load %arg5[%c3, %c0_31, %c0_32] : memref<9x4x1xf32, #tpu.memory_space<vmem>>, vector<1x4x1xf32>
    %84 = vector.shape_cast %83 : vector<1x4x1xf32> to vector<4x1xf32>
    %85 = vector.broadcast %84 : vector<4x1xf32> to vector<4x256xf32>
    %86 = arith.mulf %62, %85 : vector<4x256xf32>
    %c4 = arith.constant 4 : index
    %c0_33 = arith.constant 0 : index
    %c0_34 = arith.constant 0 : index
    %87 = vector.load %arg5[%c4, %c0_33, %c0_34] : memref<9x4x1xf32, #tpu.memory_space<vmem>>, vector<1x4x1xf32>
    %88 = vector.shape_cast %87 : vector<1x4x1xf32> to vector<4x1xf32>
    %89 = vector.broadcast %88 : vector<4x1xf32> to vector<4x256xf32>
    %90 = arith.mulf %31, %89 : vector<4x256xf32>
    %91 = arith.addf %86, %90 : vector<4x256xf32>
    %c5 = arith.constant 5 : index
    %c0_35 = arith.constant 0 : index
    %c0_36 = arith.constant 0 : index
    %92 = vector.load %arg5[%c5, %c0_35, %c0_36] : memref<9x4x1xf32, #tpu.memory_space<vmem>>, vector<1x4x1xf32>
    %93 = vector.shape_cast %92 : vector<1x4x1xf32> to vector<4x1xf32>
    %94 = vector.broadcast %93 : vector<4x1xf32> to vector<4x256xf32>
    %95 = arith.mulf %68, %94 : vector<4x256xf32>
    %96 = arith.addf %91, %95 : vector<4x256xf32>
    %c6 = arith.constant 6 : index
    %c0_37 = arith.constant 0 : index
    %c0_38 = arith.constant 0 : index
    %97 = vector.load %arg5[%c6, %c0_37, %c0_38] : memref<9x4x1xf32, #tpu.memory_space<vmem>>, vector<1x4x1xf32>
    %98 = vector.shape_cast %97 : vector<1x4x1xf32> to vector<4x1xf32>
    %99 = vector.broadcast %98 : vector<4x1xf32> to vector<4x256xf32>
    %100 = arith.mulf %62, %99 : vector<4x256xf32>
    %c7 = arith.constant 7 : index
    %c0_39 = arith.constant 0 : index
    %c0_40 = arith.constant 0 : index
    %101 = vector.load %arg5[%c7, %c0_39, %c0_40] : memref<9x4x1xf32, #tpu.memory_space<vmem>>, vector<1x4x1xf32>
    %102 = vector.shape_cast %101 : vector<1x4x1xf32> to vector<4x1xf32>
    %103 = vector.broadcast %102 : vector<4x1xf32> to vector<4x256xf32>
    %104 = arith.mulf %31, %103 : vector<4x256xf32>
    %105 = arith.addf %100, %104 : vector<4x256xf32>
    %c8 = arith.constant 8 : index
    %c0_41 = arith.constant 0 : index
    %c0_42 = arith.constant 0 : index
    %106 = vector.load %arg5[%c8, %c0_41, %c0_42] : memref<9x4x1xf32, #tpu.memory_space<vmem>>, vector<1x4x1xf32>
    %107 = vector.shape_cast %106 : vector<1x4x1xf32> to vector<4x1xf32>
    %108 = vector.broadcast %107 : vector<4x1xf32> to vector<4x256xf32>
    %109 = arith.mulf %68, %108 : vector<4x256xf32>
    %110 = arith.addf %105, %109 : vector<4x256xf32>
    %c16_i32_43 = arith.constant 16 : i32
    %111 = tpu.dynamic_rotate %82 by %c16_i32_43 dim 1 : vector<4x256xf32>, i32 -> vector<4x256xf32>
    %c0_i32_44 = arith.constant 0 : i32
    %112 = arith.sitofp %c0_i32_44 : i32 to f32
    %113 = vector.shape_cast %54 : vector<1x256xi1> to vector<1x256xi1>
    %114 = vector.broadcast %113 : vector<1x256xi1> to vector<4x256xi1>
    %115 = vector.broadcast %112 : f32 to vector<4x256xf32>
    %116 = arith.select %114, %111, %115 : vector<4x256xi1>, vector<4x256xf32>
    %117 = arith.addf %96, %116 : vector<4x256xf32>
    %c240_i32_45 = arith.constant 240 : i32
    %118 = tpu.dynamic_rotate %110 by %c240_i32_45 dim 1 : vector<4x256xf32>, i32 -> vector<4x256xf32>
    %c0_i32_46 = arith.constant 0 : i32
    %119 = arith.sitofp %c0_i32_46 : i32 to f32
    %120 = vector.shape_cast %56 : vector<1x256xi1> to vector<1x256xi1>
    %121 = vector.broadcast %120 : vector<1x256xi1> to vector<4x256xi1>
    %122 = vector.broadcast %119 : f32 to vector<4x256xf32>
    %123 = arith.select %121, %118, %122 : vector<4x256xi1>, vector<4x256xf32>
    %124 = arith.addf %117, %123 : vector<4x256xf32>
    %c0_47 = arith.constant 0 : index
    %c0_48 = arith.constant 0 : index
    %125 = vector.load %arg6[%c0_47, %c0_48] : memref<4x1xf32, #tpu.memory_space<vmem>>, vector<4x1xf32>
    %126 = vector.broadcast %125 : vector<4x1xf32> to vector<4x256xf32>
    %127 = arith.addf %124, %126 : vector<4x256xf32>
    %c0_49 = arith.constant 0 : index
    %c0_50 = arith.constant 0 : index
    %c0_51 = arith.constant 0 : index
    %128 = vector.load %arg1[%c0_49, %c0_50, %c0_51] : memref<1x4x256xf32, #tpu.memory_space<vmem>>, vector<1x4x256xf32>
    %129 = vector.shape_cast %128 : vector<1x4x256xf32> to vector<4x256xf32>
    %130 = arith.mulf %129, %127 : vector<4x256xf32>
    %c0_52 = arith.constant 0 : index
    %c0_53 = arith.constant 0 : index
    %c0_54 = arith.constant 0 : index
    %131 = vector.load %arg7[%c0_52, %c0_53, %c0_54] : memref<1x4x256xf32, #tpu.memory_space<vmem>>, vector<1x4x256xf32>
    %132 = vector.shape_cast %131 : vector<1x4x256xf32> to vector<4x256xf32>
    %133 = vector.shape_cast %130 : vector<4x256xf32> to vector<1x4x256xf32>
    tpu.vector_store %arg7[%c0_52, %c0_53, %c0_54], %133 {strides = array<i32>} : memref<1x4x256xf32, #tpu.memory_space<vmem>>, vector<1x4x256xf32>,
    return
  }
  func.func @transform_0(%arg0: i32) -> (i32, i32, i32) {
    %c0_i32 = arith.constant 0 : i32
    %c0_i32_0 = arith.constant 0 : i32
    %c0_i32_1 = arith.constant 0 : i32
    return %arg0, %c0_i32, %c0_i32_0 : i32, i32, i32
  }
  func.func @transform_1(%arg0: i32) -> (i32, i32, i32) {
    %c0_i32 = arith.constant 0 : i32
    %c0_i32_0 = arith.constant 0 : i32
    %c0_i32_1 = arith.constant 0 : i32
    return %arg0, %c0_i32, %c0_i32_0 : i32, i32, i32
  }
  func.func @transform_2(%arg0: i32) -> (i32, i32) {
    %c0_i32 = arith.constant 0 : i32
    %c0_i32_0 = arith.constant 0 : i32
    %c0_i32_1 = arith.constant 0 : i32
    return %c0_i32, %c0_i32_0 : i32, i32
  }
  func.func @transform_3(%arg0: i32) -> (i32, i32, i32) {
    %c0_i32 = arith.constant 0 : i32
    %c0_i32_0 = arith.constant 0 : i32
    %c0_i32_1 = arith.constant 0 : i32
    %c0_i32_2 = arith.constant 0 : i32
    return %c0_i32, %c0_i32_0, %c0_i32_1 : i32, i32, i32
  }
  func.func @transform_4(%arg0: i32) -> (i32, i32, i32) {
    %c0_i32 = arith.constant 0 : i32
    %c0_i32_0 = arith.constant 0 : i32
    %c0_i32_1 = arith.constant 0 : i32
    %c0_i32_2 = arith.constant 0 : i32
    return %c0_i32, %c0_i32_0, %c0_i32_1 : i32, i32, i32
  }
  func.func @transform_5(%arg0: i32) -> (i32, i32) {
    %c0_i32 = arith.constant 0 : i32
    %c0_i32_0 = arith.constant 0 : i32
    %c0_i32_1 = arith.constant 0 : i32
    return %c0_i32, %c0_i32_0 : i32, i32
  }
  func.func @transform_6(%arg0: i32) -> (i32, i32, i32) {
    %c0_i32 = arith.constant 0 : i32
    %c0_i32_0 = arith.constant 0 : i32
    %c0_i32_1 = arith.constant 0 : i32
    return %arg0, %c0_i32, %c0_i32_0 : i32, i32, i32
  }
}

</mosaic_0001>

<llo_original>
// kernel: tpu_custom_call.1
$region0: #{tpu_custom_call.1}
  #allocation0 [shape = 'u32[]', space=smem, size = 0x4, offset = 0x4, fixed_abs, tag = 'smem constant byte address 0x4 - core index']
  #allocation1 [shape = 'u32[144,128]{1,0:T(1,128)}', space=vmem, size = 0x12000, scoped, tag = 'internal scratch']
  %s0 = inlined_call_operand.vmem [shape: f32[2,4,256], index: 0, kind: input, shape index: {}]
  %s1 = inlined_call_operand.vmem [shape: f32[2,4,256], index: 1, kind: input, shape index: {}]
  %s2 = inlined_call_operand.vmem [shape: f32[4,4], index: 2, kind: input, shape index: {}]
  %s3 = inlined_call_operand.vmem [shape: f32[2,4,1], index: 3, kind: input, shape index: {}]
  %s4 = inlined_call_operand.vmem [shape: f32[9,4,1], index: 4, kind: input, shape index: {}]
  %s5 = inlined_call_operand.vmem [shape: f32[4,1], index: 5, kind: input, shape index: {}]
  %s6 = inlined_call_operand.hbm [shape: f32[2,4,256], index: 6, kind: output, shape index: {}]
  %s7 = sld [smem:[#allocation0]]
  $region57: #{tpu_custom_call.1} parent=0
    _
  %s9 = ssub.s32 1, %s7
  %s10 = scalar_select 0, %s9, %s7
  $region1: #{tpu_custom_call.1} parent=0
    #allocation2 [shape = 'u8[8192]{0}', space=vmem, size = 0x2000, scoped, tag = 'output window, operand 0']
    #allocation3 [shape = 's32[2]{0}', space=sflag, size = 0x8, scoped, tag = 'scoped memory for tpu_custom_call.1']
    %11 = vsyncpa [#allocation3], 0
    %s12 = scalar_lea.sflag [#allocation3], 1
    %13 = vsyncpa %s12, 0
    loop: start=0, step=1, limit=4
    $region2: #{tpu_custom_call.1} parent=1 // loop_pre_header
      _
    $region3: #{tpu_custom_call.1} parent=1 // loop_header
      %s15 = sphi 0, %s19
      %p16 = scmp.ge.s32.totalorder %s15, 4
      %s25 = sphi 0, %s27
      %s28 = sphi 0, %s25
      %s29 = sphi 0, %s28
      %s45 = sphi 0, %s29
      %s51 = sphi 0, %s53
      %s54 = sphi 0, %s51
      %s55 = sphi 0, %s54
      %s71 = sphi 0, %s55
      %s75 = sphi 0, %s75
      %s77 = sphi 0, %s75
      %s78 = sphi 0, %s77
      %s92 = sphi 0, %s78
      %s96 = sphi 0, %s96
      %s98 = sphi 0, %s96
      %s99 = sphi 0, %s98
      %s113 = sphi 0, %s99
      %s117 = sphi 0, %s117
      %s119 = sphi 0, %s117
      %s120 = sphi 0, %s119
      %s134 = sphi 0, %s120
      %s138 = sphi 0, %s138
      %s140 = sphi 0, %s138
      %s141 = sphi 0, %s140
      %s155 = sphi 0, %s141
      %s161 = sphi 0, %s163
      %s164 = sphi 0, %s161
      %s165 = sphi 0, %s164
      %s181 = sphi 0, %s165
    $region4: #{tpu_custom_call.1} parent=1 // loop_header_branch
      %18 = sbr.rel (%p16) target = $region8
    $region5: #{tpu_custom_call.1} parent=1 // loop_body
      %s20 = ssub.s32 %s15, 1
      %s21 = ssub.s32 %s15, 2
      %s22 = sadd.s32 %s15, 1
      %s23 = ssub.s32 %s15, %s22
      %p24 = scmp.eq.s32.totalorder %s23, 0
      %s26 = sadd.s32 %s25, 1
      %s27 = scalar_select %p24, %s25, %s26
      %p30 = pneg %p24
      %p31 = scmp.eq.s32.totalorder %s15, 1
      %p32 = por %p30, %p31
      %p33 = scmp.ne.s32.totalorder %s25, %s28
      %p34 = scmp.eq.s32.totalorder %s15, 0
      %p35 = por %p33, %p34
      %p36 = scmp.ne.s32.totalorder %s25, %s28
      %p37 = scmp.eq.s32.totalorder %s20, 1
      %p38 = por %p36, %p37
      %p39 = scmp.ne.s32.totalorder %s28, %s29
      %p40 = scmp.eq.s32.totalorder %s20, 0
      %p41 = por %p39, %p40
      %p42 = scmp.ne.s32.totalorder %s28, %s29
      %p43 = scmp.eq.s32.totalorder %s21, 1
      %p44 = por %p42, %p43
      %p46 = scmp.ne.s32.totalorder %s29, %s45
      %p47 = scmp.eq.s32.totalorder %s21, 0
      %p48 = por %p46, %p47
      %s49 = ssub.s32 %s15, %s22
      %p50 = scmp.eq.s32.totalorder %s49, 0
      %s52 = sadd.s32 %s51, 1
      %s53 = scalar_select %p50, %s51, %s52
      %p56 = pneg %p50
      %p57 = scmp.eq.s32.totalorder %s15, 1
      %p58 = por %p56, %p57
      %p59 = scmp.ne.s32.totalorder %s51, %s54
      %p60 = scmp.eq.s32.totalorder %s15, 0
      %p61 = por %p59, %p60
      %p62 = scmp.ne.s32.totalorder %s51, %s54
      %p63 = scmp.eq.s32.totalorder %s20, 1
      %p64 = por %p62, %p63
      %p65 = scmp.ne.s32.totalorder %s54, %s55
      %p66 = scmp.eq.s32.totalorder %s20, 0
      %p67 = por %p65, %p66
      %p68 = scmp.ne.s32.totalorder %s54, %s55
      %p69 = scmp.eq.s32.totalorder %s21, 1
      %p70 = por %p68, %p69
      %p72 = scmp.ne.s32.totalorder %s55, %s71
      %p73 = scmp.eq.s32.totalorder %s21, 0
      %p74 = por %p72, %p73
      %s76 = sadd.s32 %s75, 1
      %p79 = scmp.eq.s32.totalorder %s15, 1
      %p80 = scmp.ne.s32.totalorder %s75, %s77
      %p81 = scmp.eq.s32.totalorder %s15, 0
      %p82 = por %p80, %p81
      %p83 = scmp.ne.s32.totalorder %s75, %s77
      %p84 = scmp.eq.s32.totalorder %s20, 1
      %p85 = por %p83, %p84
      %p86 = scmp.ne.s32.totalorder %s77, %s78
      %p87 = scmp.eq.s32.totalorder %s20, 0
      %p88 = por %p86, %p87
      %p89 = scmp.ne.s32.totalorder %s77, %s78
      %p90 = scmp.eq.s32.totalorder %s21, 1
      %p91 = por %p89, %p90
      %p93 = scmp.ne.s32.totalorder %s78, %s92
      %p94 = scmp.eq.s32.totalorder %s21, 0
      %p95 = por %p93, %p94
      %s97 = sadd.s32 %s96, 1
      %p100 = scmp.eq.s32.totalorder %s15, 1
      %p101 = scmp.ne.s32.totalorder %s96, %s98
      %p102 = scmp.eq.s32.totalorder %s15, 0
      %p103 = por %p101, %p102
      %p104 = scmp.ne.s32.totalorder %s96, %s98
      %p105 = scmp.eq.s32.totalorder %s20, 1
      %p106 = por %p104, %p105
      %p107 = scmp.ne.s32.totalorder %s98, %s99
      %p108 = scmp.eq.s32.totalorder %s20, 0
      %p109 = por %p107, %p108
      %p110 = scmp.ne.s32.totalorder %s98, %s99
      %p111 = scmp.eq.s32.totalorder %s21, 1
      %p112 = por %p110, %p111
      %p114 = scmp.ne.s32.totalorder %s99, %s113
      %p115 = scmp.eq.s32.totalorder %s21, 0
      %p116 = por %p114, %p115
      %s118 = sadd.s32 %s117, 1
      %p121 = scmp.eq.s32.totalorder %s15, 1
      %p122 = scmp.ne.s32.totalorder %s117, %s119
      %p123 = scmp.eq.s32.totalorder %s15, 0
      %p124 = por %p122, %p123
      %p125 = scmp.ne.s32.totalorder %s117, %s119
      %p126 = scmp.eq.s32.totalorder %s20, 1
      %p127 = por %p125, %p126
      %p128 = scmp.ne.s32.totalorder %s119, %s120
      %p129 = scmp.eq.s32.totalorder %s20, 0
      %p130 = por %p128, %p129
      %p131 = scmp.ne.s32.totalorder %s119, %s120
      %p132 = scmp.eq.s32.totalorder %s21, 1
      %p133 = por %p131, %p132
      %p135 = scmp.ne.s32.totalorder %s120, %s134
      %p136 = scmp.eq.s32.totalorder %s21, 0
      %p137 = por %p135, %p136
      %s139 = sadd.s32 %s138, 1
      %p142 = scmp.eq.s32.totalorder %s15, 1
      %p143 = scmp.ne.s32.totalorder %s138, %s140
      %p144 = scmp.eq.s32.totalorder %s15, 0
      %p145 = por %p143, %p144
      %p146 = scmp.ne.s32.totalorder %s138, %s140
      %p147 = scmp.eq.s32.totalorder %s20, 1
      %p148 = por %p146, %p147
      %p149 = scmp.ne.s32.totalorder %s140, %s141
      %p150 = scmp.eq.s32.totalorder %s20, 0
      %p151 = por %p149, %p150
      %p152 = scmp.ne.s32.totalorder %s140, %s141
      %p153 = scmp.eq.s32.totalorder %s21, 1
      %p154 = por %p152, %p153
      %p156 = scmp.ne.s32.totalorder %s141, %s155
      %p157 = scmp.eq.s32.totalorder %s21, 0
      %p158 = por %p156, %p157
      %s159 = ssub.s32 %s15, %s22
      %p160 = scmp.eq.s32.totalorder %s159, 0
      %s162 = sadd.s32 %s161, 1
      %s163 = scalar_select %p160, %s161, %s162
      %p166 = pneg %p160
      %p167 = scmp.eq.s32.totalorder %s15, 1
      %p168 = por %p166, %p167
      %p169 = scmp.ne.s32.totalorder %s161, %s164
      %p170 = scmp.eq.s32.totalorder %s15, 0
      %p171 = por %p169, %p170
      %p172 = scmp.ne.s32.totalorder %s161, %s164
      %p173 = scmp.eq.s32.totalorder %s20, 1
      %p174 = por %p172, %p173
      %p175 = scmp.ne.s32.totalorder %s164, %s165
      %p176 = scmp.eq.s32.totalorder %s20, 0
      %p177 = por %p175, %p176
      %p178 = scmp.ne.s32.totalorder %s164, %s165
      %p179 = scmp.eq.s32.totalorder %s21, 1
      %p180 = por %p178, %p179
      %p182 = scmp.ne.s32.totalorder %s165, %s181
      %p183 = scmp.eq.s32.totalorder %s21, 0
      %p184 = por %p182, %p183
      %p185 = scmp.le.s32.totalorder 1, %s15
      %p186 = scmp.lt.s32.totalorder %s15, 3
      %p187 = pnand %p185, %p186
      %p188 = pneg %p187
      // Predicated region
      $region9: #{tpu_custom_call.1} parent=5 // pred_check
        _
      $region10: #{tpu_custom_call.1} parent=5 // pred_check_branch
        %190 = sbr.rel (%p187) target = $region12
      $region11: #{tpu_custom_call.1} parent=5 // pred_region
        %s191 = ssub.s32 %s15, 1
        // Predicated region
        $region13: #{tpu_custom_call.1} parent=11 // pred_check
          %p192 = pneg %p88
        $region14: #{tpu_custom_call.1} parent=11 // pred_check_branch
          %194 = sbr.rel (%p192) target = $region16
        $region15: #{tpu_custom_call.1} parent=11 // pred_region
          _
        $region16: #{tpu_custom_call.1} parent=11 // pred_fallthru
          _
        // Predicated region
        $region17: #{tpu_custom_call.1} parent=11 // pred_check
          %p195 = pneg %p109
        $region18: #{tpu_custom_call.1} parent=11 // pred_check_branch
          %197 = sbr.rel (%p195) target = $region20
        $region19: #{tpu_custom_call.1} parent=11 // pred_region
          _
        $region20: #{tpu_custom_call.1} parent=11 // pred_fallthru
          _
        // Predicated region
        $region21: #{tpu_custom_call.1} parent=11 // pred_check
          %p198 = pneg %p130
        $region22: #{tpu_custom_call.1} parent=11 // pred_check_branch
          %200 = sbr.rel (%p198) target = $region24
        $region23: #{tpu_custom_call.1} parent=11 // pred_region
          _
        $region24: #{tpu_custom_call.1} parent=11 // pred_fallthru
          _
        // Predicated region
        $region25: #{tpu_custom_call.1} parent=11 // pred_check
          %p201 = pneg %p151
        $region26: #{tpu_custom_call.1} parent=11 // pred_check_branch
          %203 = sbr.rel (%p201) target = $region28
        $region27: #{tpu_custom_call.1} parent=11 // pred_region
          _
        $region28: #{tpu_custom_call.1} parent=11 // pred_fallthru
          _
      $region12: #{tpu_custom_call.1} parent=5 // pred_fallthru
        _
      %p204 = scmp.lt.s32.totalorder %s15, 2
      // Predicated region
      $region29: #{tpu_custom_call.1} parent=5 // pred_check
        %p205 = pneg %p204
      $region30: #{tpu_custom_call.1} parent=5 // pred_check_branch
        %207 = sbr.rel (%p205) target = $region32
      $region31: #{tpu_custom_call.1} parent=5 // pred_region
        // Predicated region
        $region33: #{tpu_custom_call.1} parent=31 // pred_check
          %p208 = pneg %p35
        $region34: #{tpu_custom_call.1} parent=31 // pred_check_branch
          %210 = sbr.rel (%p208) target = $region36
        $region35: #{tpu_custom_call.1} parent=31 // pred_region
          %p211 = scmp.lt.s32.totalorder %s15, 1
          %s212 = scalar_select %p211, %s15, 1
          %s213 = smul.addr %s212, 2
          %s214 = smul.addr %s213, 4
          %s215 = scalar_lea.vmem %s0, %s214
        $region36: #{tpu_custom_call.1} parent=31 // pred_fallthru
          _
        // Predicated region
        $region37: #{tpu_custom_call.1} parent=31 // pred_check
          %p216 = pneg %p61
        $region38: #{tpu_custom_call.1} parent=31 // pred_check_branch
          %218 = sbr.rel (%p216) target = $region40
        $region39: #{tpu_custom_call.1} parent=31 // pred_region
          %p219 = scmp.lt.s32.totalorder %s15, 1
          %s220 = scalar_select %p219, %s15, 1
          %s221 = smul.addr %s220, 2
          %s222 = smul.addr %s221, 4
          %s223 = scalar_lea.vmem %s1, %s222
        $region40: #{tpu_custom_call.1} parent=31 // pred_fallthru
          _
      $region32: #{tpu_custom_call.1} parent=5 // pred_fallthru
        _
      %p224 = scmp.le.s32.totalorder 1, %s15
      %p225 = scmp.lt.s32.totalorder %s15, 3
      %p226 = pnand %p224, %p225
      %p227 = pneg %p226
      // Predicated region
      $region41: #{tpu_custom_call.1} parent=5 // pred_check
        _
      $region42: #{tpu_custom_call.1} parent=5 // pred_check_branch
        %229 = sbr.rel (%p226) target = $region44
      $region43: #{tpu_custom_call.1} parent=5 // pred_region
        %s230 = ssub.s32 %s15, 1
        %p231 = scmp.lt.s32.totalorder %s20, 1
        %s232 = scalar_select %p231, %s20, 1
        %s233 = smul.addr %s232, 2
        %s234 = smul.addr %s233, 4
        %s235 = scalar_lea.vmem %s0, %s234
        %p236 = pneg %p41
        %p237 = pneg %p38
        %p238 = scmp.lt.s32.totalorder %s20, 1
        %s239 = scalar_select %p238, %s20, 1
        %s240 = smul.addr %s239, 2
        %s241 = smul.addr %s240, 4
        %s242 = scalar_lea.vmem %s1, %s241
        %p243 = pneg %p67
        %p244 = pneg %p64
        %p245 = pneg %p88
        %p246 = pneg %p85
        %p247 = pneg %p109
        %p248 = pneg %p106
        %p249 = pneg %p130
        %p250 = pneg %p127
        %p251 = pneg %p151
        %p252 = pneg %p148
        %p253 = pneg %p177
        %p254 = pneg %p174
        %s255 = sand.u32 %s164, 1
        %s256 = scalar_lea.sflag [#allocation3], %s255
        %s257 = sand.u32 %s164, 1
        %s258 = smul.addr %s257, 8
        %s259 = scalar_lea.vmem [#allocation2], %s258
        %p260 = scmp.lt.s32.totalorder %s20, 1
        %s261 = scalar_select %p260, %s20, 1
        %s262 = smul.addr %s261, 2
        %s263 = smul.addr %s262, 4
        %s264 = scalar_lea.vmem %s0, %s263
        %p265 = scmp.lt.s32.totalorder %s20, 1
        %s266 = scalar_select %p265, %s20, 1
        %s267 = smul.addr %s266, 2
        %s268 = smul.addr %s267, 4
        %s269 = scalar_lea.vmem %s1, %s268
        %v270 = vld [vmem:[%s269] sm:$0xff]
        %v272 = vcombine.high %v270, %v270
        %vm274 = vcmask 1043456
        %v275 = vsel %vm274, %v270, 0.0
        %v276 = vsel %vm274, %v272, 0.0
        %v277 = vadd.f32 %v275, %v276
        %278 = vadd.xlane.f32.xlu0 %v277
        %v279 = vpop.xlane.xlu0 %278
        %v280 = vrot.slane %v279, 4
        %v281 = vadd.f32 %v279, %v280
        %v282 = vrot.slane %v281, 2
        %v283 = vadd.f32 %v281, %v282
        %v284 = vrot.slane %v283, 1
        %v285 = vadd.f32 %v283, %v284
        %s286 = vtos %v285
        %v287 = vrcp.pop 1024.0
        %s288 = vtos %v287
        %s289 = smul.f32 %s286, %s288
        %v290 = vmul.f32 %v270, %v270
        %v292 = vcombine.high %v290, %v290
        %v294 = vsel %vm274, %v290, 0.0
        %v295 = vsel %vm274, %v292, 0.0
        %v296 = vadd.f32 %v294, %v295
        %297 = vadd.xlane.f32.xlu0 %v296
        %v298 = vpop.xlane.xlu0 %297
        %v299 = vrot.slane %v298, 4
        %v300 = vadd.f32 %v298, %v299
        %v301 = vrot.slane %v300, 2
        %v302 = vadd.f32 %v300, %v301
        %v303 = vrot.slane %v302, 1
        %v304 = vadd.f32 %v302, %v303
        %s305 = vtos %v304
        %v306 = vrcp.pop 1024.0
        %s307 = vtos %v306
        %s308 = smul.f32 %s305, %s307
        %s309 = smul.f32 %s289, %s289
        %s310 = ssub.f32 %s308, %s309
        %s311 = smax.f32 %s310, 0.0
        %s312 = sadd.f32 %s311, 1e-05
        %v313 = vstv %s312
        %v314 = vrsqrt.pop %v313
        %s315 = vtos %v314
        %v316 = vld [vmem:[%s2] sm:$0xf]
        %v317 = vstv %s315
        %v318 = vmul.f32 %v316, %v317
        %v319 = vld [vmem:[%s3] sm:$0xf]
        %s320 = smul.f32 %s289, %s315
        %s321 = scalar_lea.vmem %s3, 4
        %v322 = vld [vmem:[%s321] sm:$0xf]
        %v323 = vstv %s320
        %v324 = vmul.f32 %v323, %v322
        %v325 = vsub.f32 %v319, %v324
        %327 = vset.pattern.permute.xlu0 0
        %328 = vperm.xlu0 %327, %v325
        %v329 = vpop.permute.xlu0 %328
        %vm331 = vcmask 31744
        %v333 = vsel %vm331, %v318, 0
        %v335 = vsel %vm274, %v270, 0
        %v337 = vsel %vm274, %v272, 0
        %339 = vmatprep.subr.mxu0 0.0
        %340 = vmatpush1.msra.mxu0 0.0
        %341 = vmatprep.subr.mxu0 0.0
        %342 = vmatpush1.msra.mxu0 0.0
        %343 = vmatprep.subr.mxu0 0.0
        %344 = vmatpush1.msra.mxu0 0.0
        %345 = vmatprep.subr.mxu0 0.0
        %346 = vmatpush1.msra.mxu0 0.0
        %347 = vmatprep.subr.mxu0 0.0
        %348 = vmatpush1.msra.mxu0 0.0
        %349 = vmatprep.subr.mxu0 0.0
        %350 = vmatpush1.msra.mxu0 0.0
        %351 = vmatprep.subr.mxu0 0.0
        %352 = vmatpush1.msra.mxu0 0.0
        %353 = vmatprep.subr.mxu0 0.0
        %354 = vmatpush1.msra.mxu0 0.0
        %355 = vmatprep.subr.mxu0 0.0
        %356 = vmatpush1.msra.mxu0 0.0
        %357 = vmatprep.subr.mxu0 0.0
        %358 = vmatpush1.msra.mxu0 0.0
        %359 = vmatprep.subr.mxu0 0.0
        %360 = vmatpush1.msra.mxu0 0.0
        %361 = vmatprep.subr.mxu0 0.0
        %362 = vmatpush1.msra.mxu0 0.0
        %363 = vmatprep.subr.mxu0 0.0
        %364 = vmatpush1.msra.mxu0 0.0
        %365 = vmatprep.subr.mxu0 0.0
        %366 = vmatpush1.msra.mxu0 0.0
        %367 = vmatprep.subr.mxu0 0.0
        %368 = vmatpush1.msra.mxu0 0.0
        %369 = vmatprep.subr.mxu0 %v337
        %370 = vmatpush1.msra.mxu0 %v335
        %371 = vmatprep.subr.mxu0 0.0
        %372 = vmatpush2.msra.mxu0 0.0
        %373 = vmatprep.subr.mxu0 0.0
        %374 = vmatpush2.msra.mxu0 0.0
        %375 = vmatprep.subr.mxu0 0.0
        %376 = vmatpush2.msra.mxu0 0.0
        %377 = vmatprep.subr.mxu0 0.0
        %378 = vmatpush2.msra.mxu0 0.0
        %379 = vmatprep.subr.mxu0 0.0
        %380 = vmatpush2.msra.mxu0 0.0
        %381 = vmatprep.subr.mxu0 0.0
        %382 = vmatpush2.msra.mxu0 0.0
        %383 = vmatprep.subr.mxu0 0.0
        %384 = vmatpush2.msra.mxu0 0.0
        %385 = vmatprep.subr.mxu0 0.0
        %386 = vmatpush2.msra.mxu0 0.0
        %387 = vmatprep.subr.mxu0 0.0
        %388 = vmatpush2.msra.mxu0 0.0
        %389 = vmatprep.subr.mxu0 0.0
        %390 = vmatpush2.msra.mxu0 0.0
        %391 = vmatprep.subr.mxu0 0.0
        %392 = vmatpush2.msra.mxu0 0.0
        %393 = vmatprep.subr.mxu0 0.0
        %394 = vmatpush2.msra.mxu0 0.0
        %395 = vmatprep.subr.mxu0 0.0
        %396 = vmatpush2.msra.mxu0 0.0
        %397 = vmatprep.subr.mxu0 0.0
        %398 = vmatpush2.msra.mxu0 0.0
        %399 = vmatprep.subr.mxu0 0.0
        %400 = vmatpush2.msra.mxu0 0.0
        %401 = vmatprep.subr.mxu0 0.0
        %402 = vmatpush2.msra.mxu0 0.0
        %403 = vmatprep.mubr.f32.mxu0 0.0
        %404 = vmatmul.mubr.f32.gmra.mxu0 %v333
        %v405 = vpop.f32.mrf.mxu0
        %v406 = vadd.f32 %v329, %v405
        %v407 = vpop.f32.mrf.mxu0
        %v408 = vadd.f32 %v329, %v407
        %409 = vdwg.mxu0
        %v410 = vlaneseq
        %v411 = vand.u32 %v410, 127
        %v412 = vadd.s32 %v411, 128
        %vm413 = vcmp.lt.s32.totalorder %v411, 0
        %v414 = vsub.s32 0, %v411
        %v415 = vsel %vm413, %v414, %v411
        %v416 = vshrl.u32 %v415, 4
        %v417 = vand.u32 %v415, 15
        %v418 = vsub.s32 0, %v417
        %v419 = vsel %vm413, %v418, %v417
        %vm420 = vcmp.lt.s32.totalorder %v412, 0
        %v421 = vsub.s32 0, %v412
        %v422 = vsel %vm420, %v421, %v412
        %v423 = vshrl.u32 %v422, 4
        %v424 = vand.u32 %v422, 15
        %v425 = vsub.s32 0, %v424
        %v426 = vsel %vm420, %v425, %v424
        %vm427 = vcmp.ne.s32.totalorder %v419, 0
        %vm428 = vcmp.ne.s32.totalorder %v426, 0
        %vm429 = vcmp.lt.s32.totalorder %v419, 0
        %vm430 = vcmp.lt.s32.totalorder %v426, 0
        %vm431 = vmand %vm429, %vm427
        %vm432 = vmand %vm430, %vm428
        %v433 = vadd.s32 %v419, 16
        %v434 = vadd.s32 %v426, 16
        %v435 = vsel %vm431, %v433, %v419
        %v436 = vsel %vm432, %v434, %v426
        %vm437 = vcmp.ge.s32.totalorder %v435, 1
        %vm438 = vcmp.ge.s32.totalorder %v436, 1
        %vm439 = vcmp.le.s32.totalorder %v435, 14
        %vm440 = vcmp.le.s32.totalorder %v436, 14
        %vm441 = vcmp.ge.s32.totalorder %v411, 16
        %vm442 = vcmp.ge.s32.totalorder %v412, 16
        %vm443 = vcmp.lt.s32.totalorder %v411, 240
        %vm444 = vcmp.lt.s32.totalorder %v412, 240
        %445 = vrot.lane.b32.xlu0 %v406, 1
        %v446 = vpop.permute.xlu0 %445
        %447 = vrot.lane.b32.xlu0 %v408, 1
        %v448 = vpop.permute.xlu0 %447
        %vm449 = vcmp.lt.s32.totalorder %v411, 1
        %v450 = vsel %vm449, %v446, %v448
        %v451 = vsel %vm449, %v448, %v446
        %v452 = vsel %vm437, 1, 0
        %v453 = vsel %vm438, 1, 0
        %vm454 = vcmp.eq.s32.totalorder %v452, 1
        %vm455 = vcmp.eq.s32.totalorder %v453, 1
        %v456 = vsel %vm454, %v451, 0.0
        %v457 = vsel %vm455, %v450, 0.0
        %458 = vrot.lane.b32.xlu0 %v406, 127
        %v459 = vpop.permute.xlu0 %458
        %460 = vrot.lane.b32.xlu0 %v408, 127
        %v461 = vpop.permute.xlu0 %460
        %vm462 = vcmp.lt.s32.totalorder %v411, 127
        %v463 = vsel %vm462, %v459, %v461
        %v464 = vsel %vm462, %v461, %v459
        %v465 = vsel %vm439, 1, 0
        %v466 = vsel %vm440, 1, 0
        %vm467 = vcmp.eq.s32.totalorder %v465, 1
        %vm468 = vcmp.eq.s32.totalorder %v466, 1
        %v469 = vsel %vm467, %v463, 0.0
        %v470 = vsel %vm468, %v464, 0.0
        %v471 = vld [vmem:[%s4] sm:$0xf]
        %473 = vset.pattern.permute.xlu0 0
        %474 = vperm.xlu0 %473, %v471
        %v475 = vpop.permute.xlu0 %474
        %v477 = vmul.f32 %v456, %v475
        %v478 = vmul.f32 %v457, %v475
        %s479 = scalar_lea.vmem %s4, 4
        %v480 = vld [vmem:[%s479] sm:$0xf]
        %482 = vset.pattern.permute.xlu0 0
        %483 = vperm.xlu0 %482, %v480
        %v484 = vpop.permute.xlu0 %483
        %v486 = vmul.f32 %v406, %v484
        %v487 = vmul.f32 %v408, %v484
        %v488 = vadd.f32 %v477, %v486
        %v489 = vadd.f32 %v478, %v487
        %s490 = scalar_lea.vmem %s4, 8
        %v491 = vld [vmem:[%s490] sm:$0xf]
        %493 = vset.pattern.permute.xlu0 0
        %494 = vperm.xlu0 %493, %v491
        %v495 = vpop.permute.xlu0 %494
        %v497 = vmul.f32 %v469, %v495
        %v498 = vmul.f32 %v470, %v495
        %v499 = vadd.f32 %v488, %v497
        %v500 = vadd.f32 %v489, %v498
        %s501 = scalar_lea.vmem %s4, 12
        %v502 = vld [vmem:[%s501] sm:$0xf]
        %504 = vset.pattern.permute.xlu0 0
        %505 = vperm.xlu0 %504, %v502
        %v506 = vpop.permute.xlu0 %505
        %v508 = vmul.f32 %v456, %v506
        %v509 = vmul.f32 %v457, %v506
        %s510 = scalar_lea.vmem %s4, 16
        %v511 = vld [vmem:[%s510] sm:$0xf]
        %513 = vset.pattern.permute.xlu0 0
        %514 = vperm.xlu0 %513, %v511
        %v515 = vpop.permute.xlu0 %514
        %v517 = vmul.f32 %v406, %v515
        %v518 = vmul.f32 %v408, %v515
        %v519 = vadd.f32 %v508, %v517
        %v520 = vadd.f32 %v509, %v518
        %s521 = scalar_lea.vmem %s4, 20
        %v522 = vld [vmem:[%s521] sm:$0xf]
        %524 = vset.pattern.permute.xlu0 0
        %525 = vperm.xlu0 %524, %v522
        %v526 = vpop.permute.xlu0 %525
        %v528 = vmul.f32 %v469, %v526
        %v529 = vmul.f32 %v470, %v526
        %v530 = vadd.f32 %v519, %v528
        %v531 = vadd.f32 %v520, %v529
        %s532 = scalar_lea.vmem %s4, 24
        %v533 = vld [vmem:[%s532] sm:$0xf]
        %535 = vset.pattern.permute.xlu0 0
        %536 = vperm.xlu0 %535, %v533
        %v537 = vpop.permute.xlu0 %536
        %v539 = vmul.f32 %v456, %v537
        %v540 = vmul.f32 %v457, %v537
        %s541 = scalar_lea.vmem %s4, 28
        %v542 = vld [vmem:[%s541] sm:$0xf]
        %544 = vset.pattern.permute.xlu0 0
        %545 = vperm.xlu0 %544, %v542
        %v546 = vpop.permute.xlu0 %545
        %v548 = vmul.f32 %v406, %v546
        %v549 = vmul.f32 %v408, %v546
        %v550 = vadd.f32 %v539, %v548
        %v551 = vadd.f32 %v540, %v549
        %s552 = scalar_lea.vmem %s4, 32
        %v553 = vld [vmem:[%s552] sm:$0xf]
        %555 = vset.pattern.permute.xlu0 0
        %556 = vperm.xlu0 %555, %v553
        %v557 = vpop.permute.xlu0 %556
        %v559 = vmul.f32 %v469, %v557
        %v560 = vmul.f32 %v470, %v557
        %v561 = vadd.f32 %v550, %v559
        %v562 = vadd.f32 %v551, %v560
        %563 = vrot.lane.b32.xlu0 %v499, 16
        %v564 = vpop.permute.xlu0 %563
        %565 = vrot.lane.b32.xlu0 %v500, 16
        %v566 = vpop.permute.xlu0 %565
        %vm567 = vcmp.lt.s32.totalorder %v411, 16
        %v568 = vsel %vm567, %v564, %v566
        %v569 = vsel %vm567, %v566, %v564
        %v570 = vsel %vm441, 1, 0
        %v571 = vsel %vm442, 1, 0
        %vm572 = vcmp.eq.s32.totalorder %v570, 1
        %vm573 = vcmp.eq.s32.totalorder %v571, 1
        %v574 = vsel %vm572, %v569, 0.0
        %v575 = vsel %vm573, %v568, 0.0
        %v576 = vadd.f32 %v530, %v574
        %v577 = vadd.f32 %v531, %v575
        %578 = vrot.lane.b32.xlu0 %v561, 112
        %v579 = vpop.permute.xlu0 %578
        %580 = vrot.lane.b32.xlu0 %v562, 112
        %v581 = vpop.permute.xlu0 %580
        %vm582 = vcmp.lt.s32.totalorder %v411, 112
        %v583 = vsel %vm582, %v579, %v581
        %v584 = vsel %vm582, %v581, %v579
        %v585 = vsel %vm443, 1, 0
        %v586 = vsel %vm444, 1, 0
        %vm587 = vcmp.eq.s32.totalorder %v585, 1
        %vm588 = vcmp.eq.s32.totalorder %v586, 1
        %v589 = vsel %vm587, %v583, 0.0
        %v590 = vsel %vm588, %v584, 0.0
        %v591 = vadd.f32 %v576, %v589
        %v592 = vadd.f32 %v577, %v590
        %v593 = vld [vmem:[%s5] sm:$0xf]
        %595 = vset.pattern.permute.xlu0 0
        %596 = vperm.xlu0 %595, %v593
        %v597 = vpop.permute.xlu0 %596
        %v599 = vadd.f32 %v591, %v597
        %v600 = vadd.f32 %v592, %v597
        %v601 = vld [vmem:[%s264] sm:$0xff]
        %v604 = vcombine.low %v599, %v600
        %v606 = vmul.f32 %v601, %v604
        %607 = vst [vmem:[%s259] sm:$0xff] %v606
        %s608 = sand.u32 %s164, 1
        %s609 = scalar_lea.sflag [#allocation3], %s608
        %s610 = sand.u32 %s164, 1
        %s611 = smul.addr %s610, 8
        %s612 = scalar_lea.vmem [#allocation2], %s611
        // Predicated region
        $region45: #{tpu_custom_call.1} parent=43 // pred_check
          %p613 = pneg %p174
        $region46: #{tpu_custom_call.1} parent=43 // pred_check_branch
          %615 = sbr.rel (%p613) target = $region48
        $region47: #{tpu_custom_call.1} parent=43 // pred_region
          %s617 = ssub.s32 128, 128
          %618 = vsyncadd %s609, %s617
          %s619 = smul.addr %s20, 2
          %s620 = smul.addr %s619, 64
          %s621 = scalar_lea.hbm %s6, %s620
          %s623 = sshll.u32 %s612, 4
          %s624 = int_to_ptr.vmem [resolvable:$true] %s623
          %626 = dma.vmem_to_hbm [thread:$0]  %s624, 128, %s621, %s609
        $region48: #{tpu_custom_call.1} parent=43 // pred_fallthru
          _
      $region44: #{tpu_custom_call.1} parent=5 // pred_fallthru
        _
      %p627 = scmp.le.s32.totalorder 2, %s15
      // Predicated region
      $region49: #{tpu_custom_call.1} parent=5 // pred_check
        %p628 = pneg %p627
      $region50: #{tpu_custom_call.1} parent=5 // pred_check_branch
        %630 = sbr.rel (%p628) target = $region52
      $region51: #{tpu_custom_call.1} parent=5 // pred_region
        %s631 = ssub.s32 %s15, 2
        // Predicated region
        $region53: #{tpu_custom_call.1} parent=51 // pred_check
          %p632 = pneg %p180
        $region54: #{tpu_custom_call.1} parent=51 // pred_check_branch
          %634 = sbr.rel (%p632) target = $region56
        $region55: #{tpu_custom_call.1} parent=51 // pred_region
          %s635 = sand.u32 %s165, 1
          %s636 = scalar_lea.sflag [#allocation3], %s635
          %s637 = sand.u32 %s165, 1
          %s638 = smul.addr %s637, 8
          %s639 = scalar_lea.vmem [#allocation2], %s638
          %640 = dma.done %s636, 128
        $region56: #{tpu_custom_call.1} parent=51 // pred_fallthru
          _
      $region52: #{tpu_custom_call.1} parent=5 // pred_fallthru
        _
    $region6: #{tpu_custom_call.1} parent=1 // loop_footer
      %s19 = sadd.s32 1, %s15
    $region7: #{tpu_custom_call.1} parent=1 // loop_footer_branch
      %14 = sbr.rel target = $region3
    $region8: #{tpu_custom_call.1} parent=1 // loop_exit
      _
    %641 = vsyncpa [#allocation3], 1
    %s642 = scalar_lea.sflag [#allocation3], 1
    %643 = vsyncpa %s642, 1

// kernel: tpu_custom_call.1
$region0: #{tpu_custom_call.1}
  #allocation0 [shape = 'u32[]', space=smem, size = 0x4, offset = 0x4, fixed_abs, tag = 'smem constant byte address 0x4 - core index']
  #allocation1 [shape = 'u32[144,128]{1,0:T(1,128)}', space=vmem, size = 0x12000, scoped, tag = 'internal scratch']
  %s0 = inlined_call_operand.vmem [shape: f32[2,4,256], index: 0, kind: input, shape index: {}]
  %s1 = inlined_call_operand.vmem [shape: f32[2,4,256], index: 1, kind: input, shape index: {}]
  %s2 = inlined_call_operand.vmem [shape: f32[4,4], index: 2, kind: input, shape index: {}]
  %s3 = inlined_call_operand.vmem [shape: f32[2,4,1], index: 3, kind: input, shape index: {}]
  %s4 = inlined_call_operand.vmem [shape: f32[9,4,1], index: 4, kind: input, shape index: {}]
  %s5 = inlined_call_operand.vmem [shape: f32[4,1], index: 5, kind: input, shape index: {}]
  %s6 = inlined_call_operand.hbm [shape: f32[2,4,256], index: 6, kind: output, shape index: {}]
  %s7 = sld [smem:[#allocation0]]
  $region57: #{tpu_custom_call.1} parent=0
    _
  %s9 = ssub.s32 1, %s7
  %s10 = scalar_select 0, %s9, %s7
  $region1: #{tpu_custom_call.1} parent=0
    #allocation2 [shape = 'u8[8192]{0}', space=vmem, size = 0x2000, scoped, tag = 'output window, operand 0']
    #allocation3 [shape = 's32[2]{0}', space=sflag, size = 0x8, scoped, tag = 'scoped memory for tpu_custom_call.1']
    %11 = vsyncpa [#allocation3], 0
    %s12 = scalar_lea.sflag [#allocation3], 1
    %13 = vsyncpa %s12, 0
    loop: start=0, step=1, limit=4
    $region2: #{tpu_custom_call.1} parent=1 // loop_pre_header
      _
    $region3: #{tpu_custom_call.1} parent=1 // loop_header
      %s15 = sphi 0, %s19
      %p16 = scmp.ge.s32.totalorder %s15, 4
      %s25 = sphi 0, %s27
      %s28 = sphi 0, %s25
      %s29 = sphi 0, %s28
      %s45 = sphi 0, %s29
      %s51 = sphi 0, %s53
      %s54 = sphi 0, %s51
      %s55 = sphi 0, %s54
      %s71 = sphi 0, %s55
      %s75 = sphi 0, %s75
      %s77 = sphi 0, %s75
      %s78 = sphi 0, %s77
      %s92 = sphi 0, %s78
      %s96 = sphi 0, %s96
      %s98 = sphi 0, %s96
      %s99 = sphi 0, %s98
      %s113 = sphi 0, %s99
      %s117 = sphi 0, %s117
      %s119 = sphi 0, %s117
      %s120 = sphi 0, %s119
      %s134 = sphi 0, %s120
      %s138 = sphi 0, %s138
      %s140 = sphi 0, %s138
      %s141 = sphi 0, %s140
      %s155 = sphi 0, %s141
      %s161 = sphi 0, %s163
      %s164 = sphi 0, %s161
      %s165 = sphi 0, %s164
      %s181 = sphi 0, %s165
    $region4: #{tpu_custom_call.1} parent=1 // loop_header_branch
      %18 = sbr.rel (%p16) target = $region8
    $region5: #{tpu_custom_call.1} parent=1 // loop_body
      %s20 = ssub.s32 %s15, 1
      %s21 = ssub.s32 %s15, 2
      %s22 = sadd.s32 %s15, 1
      %s23 = ssub.s32 %s15, %s22
      %p24 = scmp.eq.s32.totalorder %s23, 0
      %s26 = sadd.s32 %s25, 1
      %s27 = scalar_select %p24, %s25, %s26
      %p30 = pneg %p24
      %p31 = scmp.eq.s32.totalorder %s15, 1
      %p32 = por %p30, %p31
      %p33 = scmp.ne.s32.totalorder %s25, %s28
      %p34 = scmp.eq.s32.totalorder %s15, 0
      %p35 = por %p33, %p34
      %p36 = scmp.ne.s32.totalorder %s25, %s28
      %p37 = scmp.eq.s32.totalorder %s20, 1
      %p38 = por %p36, %p37
      %p39 = scmp.ne.s32.totalorder %s28, %s29
      %p40 = scmp.eq.s32.totalorder %s20, 0
      %p41 = por %p39, %p40
      %p42 = scmp.ne.s32.totalorder %s28, %s29
      %p43 = scmp.eq.s32.totalorder %s21, 1
      %p44 = por %p42, %p43
      %p46 = scmp.ne.s32.totalorder %s29, %s45
      %p47 = scmp.eq.s32.totalorder %s21, 0
      %p48 = por %p46, %p47
      %s49 = ssub.s32 %s15, %s22
      %p50 = scmp.eq.s32.totalorder %s49, 0
      %s52 = sadd.s32 %s51, 1
      %s53 = scalar_select %p50, %s51, %s52
      %p56 = pneg %p50
      %p57 = scmp.eq.s32.totalorder %s15, 1
      %p58 = por %p56, %p57
      %p59 = scmp.ne.s32.totalorder %s51, %s54
      %p60 = scmp.eq.s32.totalorder %s15, 0
      %p61 = por %p59, %p60
      %p62 = scmp.ne.s32.totalorder %s51, %s54
      %p63 = scmp.eq.s32.totalorder %s20, 1
      %p64 = por %p62, %p63
      %p65 = scmp.ne.s32.totalorder %s54, %s55
      %p66 = scmp.eq.s32.totalorder %s20, 0
      %p67 = por %p65, %p66
      %p68 = scmp.ne.s32.totalorder %s54, %s55
      %p69 = scmp.eq.s32.totalorder %s21, 1
      %p70 = por %p68, %p69
      %p72 = scmp.ne.s32.totalorder %s55, %s71
      %p73 = scmp.eq.s32.totalorder %s21, 0
      %p74 = por %p72, %p73
      %s76 = sadd.s32 %s75, 1
      %p79 = scmp.eq.s32.totalorder %s15, 1
      %p80 = scmp.ne.s32.totalorder %s75, %s77
      %p81 = scmp.eq.s32.totalorder %s15, 0
      %p82 = por %p80, %p81
      %p83 = scmp.ne.s32.totalorder %s75, %s77
      %p84 = scmp.eq.s32.totalorder %s20, 1
      %p85 = por %p83, %p84
      %p86 = scmp.ne.s32.totalorder %s77, %s78
      %p87 = scmp.eq.s32.totalorder %s20, 0
      %p88 = por %p86, %p87
      %p89 = scmp.ne.s32.totalorder %s77, %s78
      %p90 = scmp.eq.s32.totalorder %s21, 1
      %p91 = por %p89, %p90
      %p93 = scmp.ne.s32.totalorder %s78, %s92
      %p94 = scmp.eq.s32.totalorder %s21, 0
      %p95 = por %p93, %p94
      %s97 = sadd.s32 %s96, 1
      %p100 = scmp.eq.s32.totalorder %s15, 1
      %p101 = scmp.ne.s32.totalorder %s96, %s98
      %p102 = scmp.eq.s32.totalorder %s15, 0
      %p103 = por %p101, %p102
      %p104 = scmp.ne.s32.totalorder %s96, %s98
      %p105 = scmp.eq.s32.totalorder %s20, 1
      %p106 = por %p104, %p105
      %p107 = scmp.ne.s32.totalorder %s98, %s99
      %p108 = scmp.eq.s32.totalorder %s20, 0
      %p109 = por %p107, %p108
      %p110 = scmp.ne.s32.totalorder %s98, %s99
      %p111 = scmp.eq.s32.totalorder %s21, 1
      %p112 = por %p110, %p111
      %p114 = scmp.ne.s32.totalorder %s99, %s113
      %p115 = scmp.eq.s32.totalorder %s21, 0
      %p116 = por %p114, %p115
      %s118 = sadd.s32 %s117, 1
      %p121 = scmp.eq.s32.totalorder %s15, 1
      %p122 = scmp.ne.s32.totalorder %s117, %s119
      %p123 = scmp.eq.s32.totalorder %s15, 0
      %p124 = por %p122, %p123
      %p125 = scmp.ne.s32.totalorder %s117, %s119
      %p126 = scmp.eq.s32.totalorder %s20, 1
      %p127 = por %p125, %p126
      %p128 = scmp.ne.s32.totalorder %s119, %s120
      %p129 = scmp.eq.s32.totalorder %s20, 0
      %p130 = por %p128, %p129
      %p131 = scmp.ne.s32.totalorder %s119, %s120
      %p132 = scmp.eq.s32.totalorder %s21, 1
      %p133 = por %p131, %p132
      %p135 = scmp.ne.s32.totalorder %s120, %s134
      %p136 = scmp.eq.s32.totalorder %s21, 0
      %p137 = por %p135, %p136
      %s139 = sadd.s32 %s138, 1
      %p142 = scmp.eq.s32.totalorder %s15, 1
      %p143 = scmp.ne.s32.totalorder %s138, %s140
      %p144 = scmp.eq.s32.totalorder %s15, 0
      %p145 = por %p143, %p144
      %p146 = scmp.ne.s32.totalorder %s138, %s140
      %p147 = scmp.eq.s32.totalorder %s20, 1
      %p148 = por %p146, %p147
      %p149 = scmp.ne.s32.totalorder %s140, %s141
      %p150 = scmp.eq.s32.totalorder %s20, 0
      %p151 = por %p149, %p150
      %p152 = scmp.ne.s32.totalorder %s140, %s141
      %p153 = scmp.eq.s32.totalorder %s21, 1
      %p154 = por %p152, %p153
      %p156 = scmp.ne.s32.totalorder %s141, %s155
      %p157 = scmp.eq.s32.totalorder %s21, 0
      %p158 = por %p156, %p157
      %s159 = ssub.s32 %s15, %s22
      %p160 = scmp.eq.s32.totalorder %s159, 0
      %s162 = sadd.s32 %s161, 1
      %s163 = scalar_select %p160, %s161, %s162
      %p166 = pneg %p160
      %p167 = scmp.eq.s32.totalorder %s15, 1
      %p168 = por %p166, %p167
      %p169 = scmp.ne.s32.totalorder %s161, %s164
      %p170 = scmp.eq.s32.totalorder %s15, 0
      %p171 = por %p169, %p170
      %p172 = scmp.ne.s32.totalorder %s161, %s164
      %p173 = scmp.eq.s32.totalorder %s20, 1
      %p174 = por %p172, %p173
      %p175 = scmp.ne.s32.totalorder %s164, %s165
      %p176 = scmp.eq.s32.totalorder %s20, 0
      %p177 = por %p175, %p176
      %p178 = scmp.ne.s32.totalorder %s164, %s165
      %p179 = scmp.eq.s32.totalorder %s21, 1
      %p180 = por %p178, %p179
      %p182 = scmp.ne.s32.totalorder %s165, %s181
      %p183 = scmp.eq.s32.totalorder %s21, 0
      %p184 = por %p182, %p183
      %p185 = scmp.le.s32.totalorder 1, %s15
      %p186 = scmp.lt.s32.totalorder %s15, 3
      %p187 = pnand %p185, %p186
      %p188 = pneg %p187
      // Predicated region
      $region9: #{tpu_custom_call.1} parent=5 // pred_check
        _
      $region10: #{tpu_custom_call.1} parent=5 // pred_check_branch
        %190 = sbr.rel (%p187) target = $region12
      $region11: #{tpu_custom_call.1} parent=5 // pred_region
        %s191 = ssub.s32 %s15, 1
        // Predicated region
        $region13: #{tpu_custom_call.1} parent=11 // pred_check
          %p192 = pneg %p88
        $region14: #{tpu_custom_call.1} parent=11 // pred_check_branch
          %194 = sbr.rel (%p192) target = $region16
        $region15: #{tpu_custom_call.1} parent=11 // pred_region
          _
        $region16: #{tpu_custom_call.1} parent=11 // pred_fallthru
          _
        // Predicated region
        $region17: #{tpu_custom_call.1} parent=11 // pred_check
          %p195 = pneg %p109
        $region18: #{tpu_custom_call.1} parent=11 // pred_check_branch
          %197 = sbr.rel (%p195) target = $region20
        $region19: #{tpu_custom_call.1} parent=11 // pred_region
          _
        $region20: #{tpu_custom_call.1} parent=11 // pred_fallthru
          _
        // Predicated region
        $region21: #{tpu_custom_call.1} parent=11 // pred_check
          %p198 = pneg %p130
        $region22: #{tpu_custom_call.1} parent=11 // pred_check_branch
          %200 = sbr.rel (%p198) target = $region24
        $region23: #{tpu_custom_call.1} parent=11 // pred_region
          _
        $region24: #{tpu_custom_call.1} parent=11 // pred_fallthru
          _
        // Predicated region
        $region25: #{tpu_custom_call.1} parent=11 // pred_check
          %p201 = pneg %p151
        $region26: #{tpu_custom_call.1} parent=11 // pred_check_branch
          %203 = sbr.rel (%p201) target = $region28
        $region27: #{tpu_custom_call.1} parent=11 // pred_region
          _
        $region28: #{tpu_custom_call.1} parent=11 // pred_fallthru
          _
      $region12: #{tpu_custom_call.1} parent=5 // pred_fallthru
        _
      %p204 = scmp.lt.s32.totalorder %s15, 2
      // Predicated region
      $region29: #{tpu_custom_call.1} parent=5 // pred_check
        %p205 = pneg %p204
      $region30: #{tpu_custom_call.1} parent=5 // pred_check_branch
        %207 = sbr.rel (%p205) target = $region32
      $region31: #{tpu_custom_call.1} parent=5 // pred_region
        // Predicated region
        $region33: #{tpu_custom_call.1} parent=31 // pred_check
          %p208 = pneg %p35
        $region34: #{tpu_custom_call.1} parent=31 // pred_check_branch
          %210 = sbr.rel (%p208) target = $region36
        $region35: #{tpu_custom_call.1} parent=31 // pred_region
          %p211 = scmp.lt.s32.totalorder %s15, 1
          %s212 = scalar_select %p211, %s15, 1
          %s213 = smul.addr %s212, 2
          %s214 = smul.addr %s213, 4
          %s215 = scalar_lea.vmem %s0, %s214
        $region36: #{tpu_custom_call.1} parent=31 // pred_fallthru
          _
        // Predicated region
        $region37: #{tpu_custom_call.1} parent=31 // pred_check
          %p216 = pneg %p61
        $region38: #{tpu_custom_call.1} parent=31 // pred_check_branch
          %218 = sbr.rel (%p216) target = $region40
        $region39: #{tpu_custom_call.1} parent=31 // pred_region
          %p219 = scmp.lt.s32.totalorder %s15, 1
          %s220 = scalar_select %p219, %s15, 1
          %s221 = smul.addr %s220, 2
          %s222 = smul.addr %s221, 4
          %s223 = scalar_lea.vmem %s1, %s222
        $region40: #{tpu_custom_call.1} parent=31 // pred_fallthru
          _
      $region32: #{tpu_custom_call.1} parent=5 // pred_fallthru
        _
      %p224 = scmp.le.s32.totalorder 1, %s15
      %p225 = scmp.lt.s32.totalorder %s15, 3
      %p226 = pnand %p224, %p225
      %p227 = pneg %p226
      // Predicated region
      $region41: #{tpu_custom_call.1} parent=5 // pred_check
        _
      $region42: #{tpu_custom_call.1} parent=5 // pred_check_branch
        %229 = sbr.rel (%p226) target = $region44
      $region43: #{tpu_custom_call.1} parent=5 // pred_region
        %s230 = ssub.s32 %s15, 1
        %p231 = scmp.lt.s32.totalorder %s20, 1
        %s232 = scalar_select %p231, %s20, 1
        %s233 = smul.addr %s232, 2
        %s234 = smul.addr %s233, 4
        %s235 = scalar_lea.vmem %s0, %s234
        %p236 = pneg %p41
        %p237 = pneg %p38
        %p238 = scmp.lt.s32.totalorder %s20, 1
        %s239 = scalar_select %p238, %s20, 1
        %s240 = smul.addr %s239, 2
        %s241 = smul.addr %s240, 4
        %s242 = scalar_lea.vmem %s1, %s241
        %p243 = pneg %p67
        %p244 = pneg %p64
        %p245 = pneg %p88
        %p246 = pneg %p85
        %p247 = pneg %p109
        %p248 = pneg %p106
        %p249 = pneg %p130
        %p250 = pneg %p127
        %p251 = pneg %p151
        %p252 = pneg %p148
        %p253 = pneg %p177
        %p254 = pneg %p174
        %s255 = sand.u32 %s164, 1
        %s256 = scalar_lea.sflag [#allocation3], %s255
        %s257 = sand.u32 %s164, 1
        %s258 = smul.addr %s257, 8
        %s259 = scalar_lea.vmem [#allocation2], %s258
        %p260 = scmp.lt.s32.totalorder %s20, 1
        %s261 = scalar_select %p260, %s20, 1
        %s262 = smul.addr %s261, 2
        %s263 = smul.addr %s262, 4
        %s264 = scalar_lea.vmem %s0, %s263
        %p265 = scmp.lt.s32.totalorder %s20, 1
        %s266 = scalar_select %p265, %s20, 1
        %s267 = smul.addr %s266, 2
        %s268 = smul.addr %s267, 4
        %s269 = scalar_lea.vmem %s1, %s268
        %v270 = vld [vmem:[%s269] sm:$0xff]
        %v272 = vcombine.high %v270, %v270
        %vm274 = vcmask 1043456
        %v275 = vsel %vm274, %v270, 0.0
        %v276 = vsel %vm274, %v272, 0.0
        %v277 = vadd.f32 %v275, %v276
        %278 = vadd.xlane.f32.xlu0 %v277
        %v279 = vpop.xlane.xlu0 %278
        %v280 = vrot.slane %v279, 4
        %v281 = vadd.f32 %v279, %v280
        %v282 = vrot.slane %v281, 2
        %v283 = vadd.f32 %v281, %v282
        %v284 = vrot.slane %v283, 1
        %v285 = vadd.f32 %v283, %v284
        %s286 = vtos %v285
        %v287 = vrcp.pop 1024.0
        %s288 = vtos %v287
        %s289 = smul.f32 %s286, %s288
        %v290 = vmul.f32 %v270, %v270
        %v292 = vcombine.high %v290, %v290
        %v294 = vsel %vm274, %v290, 0.0
        %v295 = vsel %vm274, %v292, 0.0
        %v296 = vadd.f32 %v294, %v295
        %297 = vadd.xlane.f32.xlu0 %v296
        %v298 = vpop.xlane.xlu0 %297
        %v299 = vrot.slane %v298, 4
        %v300 = vadd.f32 %v298, %v299
        %v301 = vrot.slane %v300, 2
        %v302 = vadd.f32 %v300, %v301
        %v303 = vrot.slane %v302, 1
        %v304 = vadd.f32 %v302, %v303
        %s305 = vtos %v304
        %v306 = vrcp.pop 1024.0
        %s307 = vtos %v306
        %s308 = smul.f32 %s305, %s307
        %s309 = smul.f32 %s289, %s289
        %s310 = ssub.f32 %s308, %s309
        %s311 = smax.f32 %s310, 0.0
        %s312 = sadd.f32 %s311, 1e-05
        %v313 = vstv %s312
        %v314 = vrsqrt.pop %v313
        %s315 = vtos %v314
        %v316 = vld [vmem:[%s2] sm:$0xf]
        %v317 = vstv %s315
        %v318 = vmul.f32 %v316, %v317
        %v319 = vld [vmem:[%s3] sm:$0xf]
        %s320 = smul.f32 %s289, %s315
        %s321 = scalar_lea.vmem %s3, 4
        %v322 = vld [vmem:[%s321] sm:$0xf]
        %v323 = vstv %s320
        %v324 = vmul.f32 %v323, %v322
        %v325 = vsub.f32 %v319, %v324
        %327 = vset.pattern.permute.xlu0 0
        %328 = vperm.xlu0 %327, %v325
        %v329 = vpop.permute.xlu0 %328
        %vm331 = vcmask 31744
        %v333 = vsel %vm331, %v318, 0
        %v335 = vsel %vm274, %v270, 0
        %v337 = vsel %vm274, %v272, 0
        %339 = vmatprep.subr.mxu0 0.0
        %340 = vmatpush1.msra.mxu0 0.0
        %341 = vmatprep.subr.mxu0 0.0
        %342 = vmatpush1.msra.mxu0 0.0
        %343 = vmatprep.subr.mxu0 0.0
        %344 = vmatpush1.msra.mxu0 0.0
        %345 = vmatprep.subr.mxu0 0.0
        %346 = vmatpush1.msra.mxu0 0.0
        %347 = vmatprep.subr.mxu0 0.0
        %348 = vmatpush1.msra.mxu0 0.0
        %349 = vmatprep.subr.mxu0 0.0
        %350 = vmatpush1.msra.mxu0 0.0
        %351 = vmatprep.subr.mxu0 0.0
        %352 = vmatpush1.msra.mxu0 0.0
        %353 = vmatprep.subr.mxu0 0.0
        %354 = vmatpush1.msra.mxu0 0.0
        %355 = vmatprep.subr.mxu0 0.0
        %356 = vmatpush1.msra.mxu0 0.0
        %357 = vmatprep.subr.mxu0 0.0
        %358 = vmatpush1.msra.mxu0 0.0
        %359 = vmatprep.subr.mxu0 0.0
        %360 = vmatpush1.msra.mxu0 0.0
        %361 = vmatprep.subr.mxu0 0.0
        %362 = vmatpush1.msra.mxu0 0.0
        %363 = vmatprep.subr.mxu0 0.0
        %364 = vmatpush1.msra.mxu0 0.0
        %365 = vmatprep.subr.mxu0 0.0
        %366 = vmatpush1.msra.mxu0 0.0
        %367 = vmatprep.subr.mxu0 0.0
        %368 = vmatpush1.msra.mxu0 0.0
        %369 = vmatprep.subr.mxu0 %v337
        %370 = vmatpush1.msra.mxu0 %v335
        %371 = vmatprep.subr.mxu0 0.0
        %372 = vmatpush2.msra.mxu0 0.0
        %373 = vmatprep.subr.mxu0 0.0
        %374 = vmatpush2.msra.mxu0 0.0
        %375 = vmatprep.subr.mxu0 0.0
        %376 = vmatpush2.msra.mxu0 0.0
        %377 = vmatprep.subr.mxu0 0.0
        %378 = vmatpush2.msra.mxu0 0.0
        %379 = vmatprep.subr.mxu0 0.0
        %380 = vmatpush2.msra.mxu0 0.0
        %381 = vmatprep.subr.mxu0 0.0
        %382 = vmatpush2.msra.mxu0 0.0
        %383 = vmatprep.subr.mxu0 0.0
        %384 = vmatpush2.msra.mxu0 0.0
        %385 = vmatprep.subr.mxu0 0.0
        %386 = vmatpush2.msra.mxu0 0.0
        %387 = vmatprep.subr.mxu0 0.0
        %388 = vmatpush2.msra.mxu0 0.0
        %389 = vmatprep.subr.mxu0 0.0
        %390 = vmatpush2.msra.mxu0 0.0
        %391 = vmatprep.subr.mxu0 0.0
        %392 = vmatpush2.msra.mxu0 0.0
        %393 = vmatprep.subr.mxu0 0.0
        %394 = vmatpush2.msra.mxu0 0.0
        %395 = vmatprep.subr.mxu0 0.0
        %396 = vmatpush2.msra.mxu0 0.0
        %397 = vmatprep.subr.mxu0 0.0
        %398 = vmatpush2.msra.mxu0 0.0
        %399 = vmatprep.subr.mxu0 0.0
        %400 = vmatpush2.msra.mxu0 0.0
        %401 = vmatprep.subr.mxu0 0.0
        %402 = vmatpush2.msra.mxu0 0.0
        %403 = vmatprep.mubr.f32.mxu0 0.0
        %404 = vmatmul.mubr.f32.gmra.mxu0 %v333
        %v405 = vpop.f32.mrf.mxu0
        %v406 = vadd.f32 %v329, %v405
        %v407 = vpop.f32.mrf.mxu0
        %v408 = vadd.f32 %v329, %v407
        %409 = vdwg.mxu0
        %v410 = vlaneseq
        %v411 = vand.u32 %v410, 127
        %v412 = vadd.s32 %v411, 128
        %vm413 = vcmp.lt.s32.totalorder %v411, 0
        %v414 = vsub.s32 0, %v411
        %v415 = vsel %vm413, %v414, %v411
        %v416 = vshrl.u32 %v415, 4
        %v417 = vand.u32 %v415, 15
        %v418 = vsub.s32 0, %v417
        %v419 = vsel %vm413, %v418, %v417
        %vm420 = vcmp.lt.s32.totalorder %v412, 0
        %v421 = vsub.s32 0, %v412
        %v422 = vsel %vm420, %v421, %v412
        %v423 = vshrl.u32 %v422, 4
        %v424 = vand.u32 %v422, 15
        %v425 = vsub.s32 0, %v424
        %v426 = vsel %vm420, %v425, %v424
        %vm427 = vcmp.ne.s32.totalorder %v419, 0
        %vm428 = vcmp.ne.s32.totalorder %v426, 0
        %vm429 = vcmp.lt.s32.totalorder %v419, 0
        %vm430 = vcmp.lt.s32.totalorder %v426, 0
        %vm431 = vmand %vm429, %vm427
        %vm432 = vmand %vm430, %vm428
        %v433 = vadd.s32 %v419, 16
        %v434 = vadd.s32 %v426, 16
        %v435 = vsel %vm431, %v433, %v419
        %v436 = vsel %vm432, %v434, %v426
        %vm437 = vcmp.ge.s32.totalorder %v435, 1
        %vm438 = vcmp.ge.s32.totalorder %v436, 1
        %vm439 = vcmp.le.s32.totalorder %v435, 14
        %vm440 = vcmp.le.s32.totalorder %v436, 14
        %vm441 = vcmp.ge.s32.totalorder %v411, 16
        %vm442 = vcmp.ge.s32.totalorder %v412, 16
        %vm443 = vcmp.lt.s32.totalorder %v411, 240
        %vm444 = vcmp.lt.s32.totalorder %v412, 240
        %445 = vrot.lane.b32.xlu0 %v406, 1
        %v446 = vpop.permute.xlu0 %445
        %447 = vrot.lane.b32.xlu0 %v408, 1
        %v448 = vpop.permute.xlu0 %447
        %vm449 = vcmp.lt.s32.totalorder %v411, 1
        %v450 = vsel %vm449, %v446, %v448
        %v451 = vsel %vm449, %v448, %v446
        %v452 = vsel %vm437, 1, 0
        %v453 = vsel %vm438, 1, 0
        %vm454 = vcmp.eq.s32.totalorder %v452, 1
        %vm455 = vcmp.eq.s32.totalorder %v453, 1
        %v456 = vsel %vm454, %v451, 0.0
        %v457 = vsel %vm455, %v450, 0.0
        %458 = vrot.lane.b32.xlu0 %v406, 127
        %v459 = vpop.permute.xlu0 %458
        %460 = vrot.lane.b32.xlu0 %v408, 127
        %v461 = vpop.permute.xlu0 %460
        %vm462 = vcmp.lt.s32.totalorder %v411, 127
        %v463 = vsel %vm462, %v459, %v461
        %v464 = vsel %vm462, %v461, %v459
        %v465 = vsel %vm439, 1, 0
        %v466 = vsel %vm440, 1, 0
        %vm467 = vcmp.eq.s32.totalorder %v465, 1
        %vm468 = vcmp.eq.s32.totalorder %v466, 1
        %v469 = vsel %vm467, %v463, 0.0
        %v470 = vsel %vm468, %v464, 0.0
        %v471 = vld [vmem:[%s4] sm:$0xf]
        %473 = vset.pattern.permute.xlu0 0
        %474 = vperm.xlu0 %473, %v471
        %v475 = vpop.permute.xlu0 %474
        %v477 = vmul.f32 %v456, %v475
        %v478 = vmul.f32 %v457, %v475
        %s479 = scalar_lea.vmem %s4, 4
        %v480 = vld [vmem:[%s479] sm:$0xf]
        %482 = vset.pattern.permute.xlu0 0
        %483 = vperm.xlu0 %482, %v480
        %v484 = vpop.permute.xlu0 %483
        %v486 = vmul.f32 %v406, %v484
        %v487 = vmul.f32 %v408, %v484
        %v488 = vadd.f32 %v477, %v486
        %v489 = vadd.f32 %v478, %v487
        %s490 = scalar_lea.vmem %s4, 8
        %v491 = vld [vmem:[%s490] sm:$0xf]
        %493 = vset.pattern.permute.xlu0 0
        %494 = vperm.xlu0 %493, %v491
        %v495 = vpop.permute.xlu0 %494
        %v497 = vmul.f32 %v469, %v495
        %v498 = vmul.f32 %v470, %v495
        %v499 = vadd.f32 %v488, %v497
        %v500 = vadd.f32 %v489, %v498
        %s501 = scalar_lea.vmem %s4, 12
        %v502 = vld [vmem:[%s501] sm:$0xf]
        %504 = vset.pattern.permute.xlu0 0
        %505 = vperm.xlu0 %504, %v502
        %v506 = vpop.permute.xlu0 %505
        %v508 = vmul.f32 %v456, %v506
        %v509 = vmul.f32 %v457, %v506
        %s510 = scalar_lea.vmem %s4, 16
        %v511 = vld [vmem:[%s510] sm:$0xf]
        %513 = vset.pattern.permute.xlu0 0
        %514 = vperm.xlu0 %513, %v511
        %v515 = vpop.permute.xlu0 %514
        %v517 = vmul.f32 %v406, %v515
        %v518 = vmul.f32 %v408, %v515
        %v519 = vadd.f32 %v508, %v517
        %v520 = vadd.f32 %v509, %v518
        %s521 = scalar_lea.vmem %s4, 20
        %v522 = vld [vmem:[%s521] sm:$0xf]
        %524 = vset.pattern.permute.xlu0 0
        %525 = vperm.xlu0 %524, %v522
        %v526 = vpop.permute.xlu0 %525
        %v528 = vmul.f32 %v469, %v526
        %v529 = vmul.f32 %v470, %v526
        %v530 = vadd.f32 %v519, %v528
        %v531 = vadd.f32 %v520, %v529
        %s532 = scalar_lea.vmem %s4, 24
        %v533 = vld [vmem:[%s532] sm:$0xf]
        %535 = vset.pattern.permute.xlu0 0
        %536 = vperm.xlu0 %535, %v533
        %v537 = vpop.permute.xlu0 %536
        %v539 = vmul.f32 %v456, %v537
        %v540 = vmul.f32 %v457, %v537
        %s541 = scalar_lea.vmem %s4, 28
        %v542 = vld [vmem:[%s541] sm:$0xf]
        %544 = vset.pattern.permute.xlu0 0
        %545 = vperm.xlu0 %544, %v542
        %v546 = vpop.permute.xlu0 %545
        %v548 = vmul.f32 %v406, %v546
        %v549 = vmul.f32 %v408, %v546
        %v550 = vadd.f32 %v539, %v548
        %v551 = vadd.f32 %v540, %v549
        %s552 = scalar_lea.vmem %s4, 32
        %v553 = vld [vmem:[%s552] sm:$0xf]
        %555 = vset.pattern.permute.xlu0 0
        %556 = vperm.xlu0 %555, %v553
        %v557 = vpop.permute.xlu0 %556
        %v559 = vmul.f32 %v469, %v557
        %v560 = vmul.f32 %v470, %v557
        %v561 = vadd.f32 %v550, %v559
        %v562 = vadd.f32 %v551, %v560
        %563 = vrot.lane.b32.xlu0 %v499, 16
        %v564 = vpop.permute.xlu0 %563
        %565 = vrot.lane.b32.xlu0 %v500, 16
        %v566 = vpop.permute.xlu0 %565
        %vm567 = vcmp.lt.s32.totalorder %v411, 16
        %v568 = vsel %vm567, %v564, %v566
        %v569 = vsel %vm567, %v566, %v564
        %v570 = vsel %vm441, 1, 0
        %v571 = vsel %vm442, 1, 0
        %vm572 = vcmp.eq.s32.totalorder %v570, 1
        %vm573 = vcmp.eq.s32.totalorder %v571, 1
        %v574 = vsel %vm572, %v569, 0.0
        %v575 = vsel %vm573, %v568, 0.0
        %v576 = vadd.f32 %v530, %v574
        %v577 = vadd.f32 %v531, %v575
        %578 = vrot.lane.b32.xlu0 %v561, 112
        %v579 = vpop.permute.xlu0 %578
        %580 = vrot.lane.b32.xlu0 %v562, 112
        %v581 = vpop.permute.xlu0 %580
        %vm582 = vcmp.lt.s32.totalorder %v411, 112
        %v583 = vsel %vm582, %v579, %v581
        %v584 = vsel %vm582, %v581, %v579
        %v585 = vsel %vm443, 1, 0
        %v586 = vsel %vm444, 1, 0
        %vm587 = vcmp.eq.s32.totalorder %v585, 1
        %vm588 = vcmp.eq.s32.totalorder %v586, 1
        %v589 = vsel %vm587, %v583, 0.0
        %v590 = vsel %vm588, %v584, 0.0
        %v591 = vadd.f32 %v576, %v589
        %v592 = vadd.f32 %v577, %v590
        %v593 = vld [vmem:[%s5] sm:$0xf]
        %595 = vset.pattern.permute.xlu0 0
        %596 = vperm.xlu0 %595, %v593
        %v597 = vpop.permute.xlu0 %596
        %v599 = vadd.f32 %v591, %v597
        %v600 = vadd.f32 %v592, %v597
        %v601 = vld [vmem:[%s264] sm:$0xff]
        %v604 = vcombine.low %v599, %v600
        %v606 = vmul.f32 %v601, %v604
        %607 = vst [vmem:[%s259] sm:$0xff] %v606
        %s608 = sand.u32 %s164, 1
        %s609 = scalar_lea.sflag [#allocation3], %s608
        %s610 = sand.u32 %s164, 1
        %s611 = smul.addr %s610, 8
        %s612 = scalar_lea.vmem [#allocation2], %s611
        // Predicated region
        $region45: #{tpu_custom_call.1} parent=43 // pred_check
          %p613 = pneg %p174
        $region46: #{tpu_custom_call.1} parent=43 // pred_check_branch
          %615 = sbr.rel (%p613) target = $region48
        $region47: #{tpu_custom_call.1} parent=43 // pred_region
          %s617 = ssub.s32 128, 128
          %618 = vsyncadd %s609, %s617
          %s619 = smul.addr %s20, 2
          %s620 = smul.addr %s619, 64
          %s621 = scalar_lea.hbm %s6, %s620
          %s623 = sshll.u32 %s612, 4
          %s624 = int_to_ptr.vmem [resolvable:$true] %s623
          %626 = dma.vmem_to_hbm [thread:$0]  %s624, 128, %s621, %s609
        $region48: #{tpu_custom_call.1} parent=43 // pred_fallthru
          _
      $region44: #{tpu_custom_call.1} parent=5 // pred_fallthru
        _
      %p627 = scmp.le.s32.totalorder 2, %s15
      // Predicated region
      $region49: #{tpu_custom_call.1} parent=5 // pred_check
        %p628 = pneg %p627
      $region50: #{tpu_custom_call.1} parent=5 // pred_check_branch
        %630 = sbr.rel (%p628) target = $region52
      $region51: #{tpu_custom_call.1} parent=5 // pred_region
        %s631 = ssub.s32 %s15, 2
        // Predicated region
        $region53: #{tpu_custom_call.1} parent=51 // pred_check
          %p632 = pneg %p180
        $region54: #{tpu_custom_call.1} parent=51 // pred_check_branch
          %634 = sbr.rel (%p632) target = $region56
        $region55: #{tpu_custom_call.1} parent=51 // pred_region
          %s635 = sand.u32 %s165, 1
          %s636 = scalar_lea.sflag [#allocation3], %s635
          %s637 = sand.u32 %s165, 1
          %s638 = smul.addr %s637, 8
          %s639 = scalar_lea.vmem [#allocation2], %s638
          %640 = dma.done %s636, 128
        $region56: #{tpu_custom_call.1} parent=51 // pred_fallthru
          _
      $region52: #{tpu_custom_call.1} parent=5 // pred_fallthru
        _
    $region6: #{tpu_custom_call.1} parent=1 // loop_footer
      %s19 = sadd.s32 1, %s15
    $region7: #{tpu_custom_call.1} parent=1 // loop_footer_branch
      %14 = sbr.rel target = $region3
    $region8: #{tpu_custom_call.1} parent=1 // loop_exit
      _
    %641 = vsyncpa [#allocation3], 1
    %s642 = scalar_lea.sflag [#allocation3], 1
    %643 = vsyncpa %s642, 1

</llo_original>
